<compile_context>
chip_gen: v7x
topology: tpu7x:2x2x1
jax: 0.10.0
libtpu: 0.0.40
codegen_flags: <defaults>
</compile_context>

<pallas_src>
import functools

import numpy as np
import jax
import jax.numpy as jnp
from jax import lax
from jax.experimental import pallas as pl
from jax.experimental.pallas import tpu as pltpu

K_DW = 5              # cv2 depthwise kernel size
PAD_DW = K_DW // 2    # = autopad(5) = 2
BN_EPS = 1e-5


def _round_up(x, m):
    return (x + m - 1) // m * m


def _ghost_conv_kernel(w1_ref, b1_ref, w2_ref, b2_ref, mask_ref,
                       x_ref, out_ref, ypad_ref, *, c_, W, L, A, R):
    """One grid step = nb whole images flattened to L = nb*HWp lanes."""
    # ------- cv1: 1x1 conv (+ folded BN) as ONE long MXU matmul -------
    # Default matmul precision (single-pass MXU path); HIGHEST would force
    # multi-pass f32 emulation.  BN is folded, so accuracy cost is negligible.
    y = jnp.dot(w1_ref[...], x_ref[...],
                preferred_element_type=jnp.float32) + b1_ref[...]
    y = y * jax.nn.sigmoid(y)                       # SiLU
    out_ref[0:c_, :] = y                            # lane-dense store (L lanes)

    # ------- cv2: 5x5 depthwise conv (+ folded BN) -------
    # Padded flat scratch layout: [A zeros | y (L) | R zeros], with A, R
    # multiples of 128 so the interior store and the margin zeroing are
    # unmasked, lane-aligned vst streams.  Only the margins are zeroed (the
    # interior is fully rewritten every step; never gate this on program_id).
    ypad_ref[:, 0:A] = jnp.zeros((c_, A), jnp.float32)
    ypad_ref[:, A + L:A + L + R] = jnp.zeros((c_, R), jnp.float32)
    ypad_ref[:, A:A + L] = y

    # Each of the 25 taps: one shifted vld from the padded scratch, one
    # combined row+col validity-mask multiply (precomputed, used once each),
    # one per-channel weight multiply; accumulated on two chains for VALU ILP.
    # TODO(synk): if a bundle dump shows these misaligned slices materialize
    # VMEM copies, switch to pltpu.roll(y, shift, axis=-1) per tap (XLU slot)
    # and drop the scratch entirely.
    acc0 = jnp.zeros((c_, L), jnp.float32)
    acc1 = jnp.zeros((c_, L), jnp.float32)
    for ki in range(K_DW):
        for kj in range(K_DW):
            t = ki * K_DW + kj
            off = (ki - PAD_DW) * W + (kj - PAD_DW)
            win = ypad_ref[:, A + off:A + off + L]          # (c_, L) shifted vld
            term = w2_ref[:, t:t + 1] * (mask_ref[t:t + 1, :] * win)
            if t % 2 == 0:
                acc0 = acc0 + term
            else:
                acc1 = acc1 + term
    z = acc0 + acc1 + b2_ref[...]
    z = z * jax.nn.sigmoid(z)                       # SiLU
    out_ref[c_:2 * c_, :] = z                       # lane-dense store


def _pick_nb(N, c1, c_, HWp, budget_bytes):
    """Images per grid step: VMEM-budgeted, megacore-aware, divisor of N."""
    # Per-image f32 VMEM inside one grid step: double-buffered x block (2*c1)
    # + out block (2*2c_), the (25,) mask block (2*25), the ypad interior
    # (c_), and ~6 (c_,)-row intermediates (y, win, term, acc0, acc1, z).
    per_image = 4 * HWp * (2 * c1 + 4 * c_ + 2 * 25 + c_ + 6 * c_)
    nb = max(1, int(budget_bytes // max(per_image, 1)))
    if N >= 2:
        nb = min(nb, N // 2)      # grid >= 2 so both v7x TensorCores get work
    nb = max(1, min(nb, N))
    while N % nb:                 # keep it a divisor of N
        nb -= 1
    return nb


def ghost_conv(x, w_cv1, bn1, w_cv2, bn2, *, eps=BN_EPS, nb=None):
    """GhostConv forward (inference).

    x:      (N, c1, H, W) float32
    w_cv1:  (c_, c1, 1, 1)  cv1 conv weight (bias=False)
    w_cv2:  (c_, 1, 5, 5)   cv2 depthwise conv weight (bias=False)
    bn1, bn2: tuples (gamma, beta, running_mean, running_var), each (c_,)
    returns (N, 2*c_, H, W) float32
    """
    N, c1, H, W = x.shape
    c_ = w_cv1.shape[0]
    HW = H * W
    HWp = _round_up(HW, 128)        # lane-pad each image -> always (8,128)-clean

    # ---- fold BatchNorm (eval mode) into the conv weights / biases ----
    g1, be1, m1, v1 = bn1
    g2, be2, m2, v2 = bn2
    s1 = g1 / jnp.sqrt(v1 + eps)
    w1_eff = (w_cv1[:, :, 0, 0] * s1[:, None]).astype(jnp.float32)        # (c_, c1)
    b1_eff = (be1 - s1 * m1).astype(jnp.float32).reshape(c_, 1)           # (c_, 1)
    s2 = g2 / jnp.sqrt(v2 + eps)
    w2_eff = (w_cv2[:, 0] * s2[:, None, None]).reshape(c_, K_DW * K_DW)
    w2_eff = w2_eff.astype(jnp.float32)                                   # (c_, 25)
    b2_eff = (be2 - s2 * m2).astype(jnp.float32).reshape(c_, 1)           # (c_, 1)

    # ---- combined per-tap validity masks (row AND col), periodic per image ----
    p = np.arange(HWp)
    ii, jj = p // W, p % W
    inb = p < HW
    mask_np = np.stack(
        [(inb
          & (ii + (ki - PAD_DW) >= 0) & (ii + (ki - PAD_DW) < H)
          & (jj + (kj - PAD_DW) >= 0) & (jj + (kj - PAD_DW) < W))
         for ki in range(K_DW) for kj in range(K_DW)],
        axis=0).astype(np.float32)                                        # (25, HWp)

    # ---- VMEM-aware block size + explicit scoped-VMEM limit ----
    try:
        vmem_cap = int(pltpu.get_tpu_info().vmem_capacity_bytes)
    except Exception:
        vmem_cap = 64 << 20                       # conservative (v7x per-TC VMEM)
    vmem_limit = int(min(max(vmem_cap - (8 << 20), 16 << 20), 112 << 20))
    if nb is None:
        nb = _pick_nb(N, c1, c_, HWp, int(0.6 * vmem_limit))
    else:
        nb = max(1, min(int(nb), N))
        while N % nb:
            nb -= 1
    L = nb * HWp
    A = _round_up(2 * W + 2, 128)                 # lane-aligned left margin (>= 2W+2)
    R = A                                         # right margin, same, aligned

    # ---- layout plumbing (XLA, once): (N,c1,H,W) -> lane-dense slab (c1, N*HWp) ----
    x_flat = x.reshape(N, c1, HW).astype(jnp.float32)
    if HWp != HW:
        x_flat = jnp.pad(x_flat, ((0, 0), (0, 0), (0, HWp - HW)))
    x2 = jnp.transpose(x_flat, (1, 0, 2)).reshape(c1, N * HWp)
    mask_blk = jnp.asarray(np.tile(mask_np, (1, nb)))                     # (25, L)

    kernel = functools.partial(_ghost_conv_kernel, c_=c_, W=W, L=L, A=A, R=R)

    out2 = pl.pallas_call(
        kernel,
        out_shape=jax.ShapeDtypeStruct((2 * c_, N * HWp), jnp.float32),
        grid=(N // nb,),
        in_specs=[
            pl.BlockSpec((c_, c1), lambda g: (0, 0)),                 # folded w1
            pl.BlockSpec((c_, 1), lambda g: (0, 0)),                  # folded b1
            pl.BlockSpec((c_, K_DW * K_DW), lambda g: (0, 0)),        # folded w2
            pl.BlockSpec((c_, 1), lambda g: (0, 0)),                  # folded b2
            pl.BlockSpec((K_DW * K_DW, L), lambda g: (0, 0)),         # tap masks
            # TODO(synk): add pipeline_mode=pl.Buffered(3) on x if the input
            # DMA becomes exposed on v5e after the compute shrink.
            pl.BlockSpec((c1, L), lambda g: (0, g)),                  # x slab
        ],
        out_specs=pl.BlockSpec((2 * c_, L), lambda g: (0, g)),
        scratch_shapes=[pltpu.VMEM((c_, A + L + R), jnp.float32)],
        compiler_params=pltpu.CompilerParams(
            dimension_semantics=("parallel",),
            vmem_limit_bytes=vmem_limit),
    )(w1_eff, b1_eff, w2_eff, b2_eff, mask_blk, x2)

    out = jnp.transpose(out2.reshape(2 * c_, N, HWp), (1, 0, 2))[:, :, :HW]
    return out.reshape(N, 2 * c_, H, W)


if __name__ == "__main__":
    key = jax.random.PRNGKey(0)
    k = jax.random.split(key, 11)

    N, C1, H, W = 2, 4, 16, 16
    C2 = 8
    C_ = C2 // 2

    x = jax.random.normal(k[0], (N, C1, H, W), dtype=jnp.float32)

    # Conv weights (PyTorch-like uniform init), bias=False as in the module.
    fan1 = C1 * 1 * 1
    w_cv1 = jax.random.uniform(k[1], (C_, C1, 1, 1), jnp.float32,
                               -1.0 / np.sqrt(fan1), 1.0 / np.sqrt(fan1))
    fan2 = 1 * K_DW * K_DW
    w_cv2 = jax.random.uniform(k[2], (C_, 1, K_DW, K_DW), jnp.float32,
                               -1.0 / np.sqrt(fan2), 1.0 / np.sqrt(fan2))

    # Non-trivial BatchNorm (inference) parameters to exercise the folding.
    bn1 = (jax.random.uniform(k[3], (C_,), jnp.float32, 0.5, 1.5),    # gamma
           jax.random.normal(k[4], (C_,), jnp.float32) * 0.1,         # beta
           jax.random.normal(k[5], (C_,), jnp.float32) * 0.1,         # running_mean
           jax.random.uniform(k[6], (C_,), jnp.float32, 0.5, 1.5))    # running_var
    bn2 = (jax.random.uniform(k[7], (C_,), jnp.float32, 0.5, 1.5),
           jax.random.normal(k[8], (C_,), jnp.float32) * 0.1,
           jax.random.normal(k[9], (C_,), jnp.float32) * 0.1,
           jax.random.uniform(k[10], (C_,), jnp.float32, 0.5, 1.5))

    out = jax.block_until_ready(ghost_conv(x, w_cv1, bn1, w_cv2, bn2))

    # ---- plain-JAX reference (eval-mode BN), for verification ----
    def bn_eval(t, pms, eps=BN_EPS):
        g, b, m, v = pms
        g, b, m, v = (a.reshape(1, -1, 1, 1) for a in (g, b, m, v))
        return (t - m) / jnp.sqrt(v + eps) * g + b

    y_ref = lax.conv_general_dilated(
        x, w_cv1, (1, 1), ((0, 0), (0, 0)),
        dimension_numbers=("NCHW", "OIHW", "NCHW"),
        precision=lax.Precision.HIGHEST)
    y_ref = bn_eval(y_ref, bn1)
    y_ref = y_ref * jax.nn.sigmoid(y_ref)

    z_ref = lax.conv_general_dilated(
        y_ref, w_cv2, (1, 1), ((PAD_DW, PAD_DW), (PAD_DW, PAD_DW)),
        dimension_numbers=("NCHW", "OIHW", "NCHW"),
        feature_group_count=C_,
        precision=lax.Precision.HIGHEST)
    z_ref = bn_eval(z_ref, bn2)
    z_ref = z_ref * jax.nn.sigmoid(z_ref)

    ref = jnp.concatenate([y_ref, z_ref], axis=1)

    assert out.shape == (N, C2, H, W)
    # Tolerance accounts for the default-precision (single-pass) MXU matmul
    # in cv1 vs. the HIGHEST-precision f32 reference.
    np.testing.assert_allclose(np.asarray(out), np.asarray(ref),
                               rtol=2e-2, atol=2e-2)
    print("KERNEL_OK")
</pallas_src>

<mosaic_0001>
module attributes {stable_mosaic.version = 11 : i64} {
  func.func @_ghost_conv_kernel(%arg0: i32, %arg1: memref<4x4xf32, #tpu.memory_space<vmem>>, %arg2: memref<4x1xf32, #tpu.memory_space<vmem>>, %arg3: memref<4x25xf32, #tpu.memory_space<vmem>>, %arg4: memref<4x1xf32, #tpu.memory_space<vmem>>, %arg5: memref<25x256xf32, #tpu.memory_space<vmem>>, %arg6: memref<4x256xf32, #tpu.memory_space<vmem>>, %arg7: memref<8x256xf32, #tpu.memory_space<vmem>>, %arg8: memref<4x512xf32, #tpu.memory_space<vmem>>) attributes {dimension_semantics = [#tpu.dimension_semantics<parallel>], iteration_bounds = array<i64: 2>, scalar_prefetch = 0 : i64, scratch_operands = 1 : i64, tpu.core_type = #tpu.core_type<tc>, window_params = [{pipeline_mode = #tpu.pipeline_mode<synchronous>, transform_indices = @transform_0, window_bounds = array<i64: 4, 4>}, {pipeline_mode = #tpu.pipeline_mode<synchronous>, transform_indices = @transform_1, window_bounds = array<i64: 4, 1>}, {pipeline_mode = #tpu.pipeline_mode<synchronous>, transform_indices = @transform_2, window_bounds = array<i64: 4, 25>}, {pipeline_mode = #tpu.pipeline_mode<synchronous>, transform_indices = @transform_3, window_bounds = array<i64: 4, 1>}, {pipeline_mode = #tpu.pipeline_mode<synchronous>, transform_indices = @transform_4, window_bounds = array<i64: 25, 256>}, {transform_indices = @transform_5, window_bounds = array<i64: 4, 256>}, {transform_indices = @transform_6, window_bounds = array<i64: 8, 256>}]} {
    %c0 = arith.constant 0 : index
    %c0_0 = arith.constant 0 : index
    %0 = vector.load %arg1[%c0, %c0_0] : memref<4x4xf32, #tpu.memory_space<vmem>>, vector<4x4xf32>
    %c0_1 = arith.constant 0 : index
    %c0_2 = arith.constant 0 : index
    %1 = vector.load %arg6[%c0_1, %c0_2] : memref<4x256xf32, #tpu.memory_space<vmem>>, vector<4x256xf32>
    %cst = arith.constant dense<0.000000e+00> : vector<4x256xf32>
    %2 = tpu.matmul %0, %1, %cst {dimension_numbers = #tpu.dot_dimension_numbers<[1], [0], [0], [1], [0, 0, 1, 1], [], []>} : vector<4x4xf32>, vector<4x256xf32>, vector<4x256xf32> -> vector<4x256xf32>
    %c0_3 = arith.constant 0 : index
    %c0_4 = arith.constant 0 : index
    %3 = vector.load %arg2[%c0_3, %c0_4] : memref<4x1xf32, #tpu.memory_space<vmem>>, vector<4x1xf32>
    %4 = vector.broadcast %3 : vector<4x1xf32> to vector<4x256xf32>
    %5 = arith.addf %2, %4 : vector<4x256xf32>
    %6 = arith.negf %5 : vector<4x256xf32>
    %7 = math.exp %6 : vector<4x256xf32>
    %cst_5 = arith.constant 1.000000e+00 : f32
    %8 = vector.broadcast %cst_5 : f32 to vector<4x256xf32>
    %9 = arith.addf %8, %7 : vector<4x256xf32>
    %10 = arith.divf %8, %9 : vector<4x256xf32>
    %11 = arith.mulf %5, %10 : vector<4x256xf32>
    %c0_6 = arith.constant 0 : index
    %c0_7 = arith.constant 0 : index
    %12 = vector.load %arg7[%c0_6, %c0_7] : memref<8x256xf32, #tpu.memory_space<vmem>>, vector<4x256xf32>
    tpu.vector_store %arg7[%c0_6, %c0_7], %11 {strides = array<i32>} : memref<8x256xf32, #tpu.memory_space<vmem>>, vector<4x256xf32>,
    %cst_8 = arith.constant 0.000000e+00 : f32
    %13 = vector.broadcast %cst_8 : f32 to vector<4x128xf32>
    %c0_9 = arith.constant 0 : index
    %c0_10 = arith.constant 0 : index
    %14 = vector.load %arg8[%c0_9, %c0_10] : memref<4x512xf32, #tpu.memory_space<vmem>>, vector<4x128xf32>
    tpu.vector_store %arg8[%c0_9, %c0_10], %13 {strides = array<i32>} : memref<4x512xf32, #tpu.memory_space<vmem>>, vector<4x128xf32>,
    %cst_11 = arith.constant 0.000000e+00 : f32
    %15 = vector.broadcast %cst_11 : f32 to vector<4x128xf32>
    %c0_12 = arith.constant 0 : index
    %c384 = arith.constant 384 : index
    %16 = vector.load %arg8[%c0_12, %c384] : memref<4x512xf32, #tpu.memory_space<vmem>>, vector<4x128xf32>
    tpu.vector_store %arg8[%c0_12, %c384], %15 {strides = array<i32>} : memref<4x512xf32, #tpu.memory_space<vmem>>, vector<4x128xf32>,
    %c0_13 = arith.constant 0 : index
    %c128 = arith.constant 128 : index
    %17 = vector.load %arg8[%c0_13, %c128] : memref<4x512xf32, #tpu.memory_space<vmem>>, vector<4x256xf32>
    tpu.vector_store %arg8[%c0_13, %c128], %11 {strides = array<i32>} : memref<4x512xf32, #tpu.memory_space<vmem>>, vector<4x256xf32>,
    %cst_14 = arith.constant 0.000000e+00 : f32
    %18 = vector.broadcast %cst_14 : f32 to vector<4x256xf32>
    %cst_15 = arith.constant 0.000000e+00 : f32
    %19 = vector.broadcast %cst_15 : f32 to vector<4x256xf32>
    %c0_16 = arith.constant 0 : index
    %c94 = arith.constant 94 : index
    %20 = vector.load %arg8[%c0_16, %c94] : memref<4x512xf32, #tpu.memory_space<vmem>>, vector<4x256xf32>
    %c0_17 = arith.constant 0 : index
    %c0_18 = arith.constant 0 : index
    %21 = vector.load %arg3[%c0_17, %c0_18] : memref<4x25xf32, #tpu.memory_space<vmem>>, vector<4x1xf32>
    %c0_19 = arith.constant 0 : index
    %c0_20 = arith.constant 0 : index
    %22 = vector.load %arg5[%c0_19, %c0_20] : memref<25x256xf32, #tpu.memory_space<vmem>>, vector<1x256xf32>
    %23 = vector.broadcast %22 : vector<1x256xf32> to vector<4x256xf32>
    %24 = arith.mulf %23, %20 : vector<4x256xf32>
    %25 = vector.broadcast %21 : vector<4x1xf32> to vector<4x256xf32>
    %26 = arith.mulf %25, %24 : vector<4x256xf32>
    %27 = arith.addf %18, %26 : vector<4x256xf32>
    %c0_21 = arith.constant 0 : index
    %c95 = arith.constant 95 : index
    %28 = vector.load %arg8[%c0_21, %c95] : memref<4x512xf32, #tpu.memory_space<vmem>>, vector<4x256xf32>
    %c0_22 = arith.constant 0 : index
    %c1 = arith.constant 1 : index
    %29 = vector.load %arg3[%c0_22, %c1] : memref<4x25xf32, #tpu.memory_space<vmem>>, vector<4x1xf32>
    %c1_23 = arith.constant 1 : index
    %c0_24 = arith.constant 0 : index
    %30 = vector.load %arg5[%c1_23, %c0_24] : memref<25x256xf32, #tpu.memory_space<vmem>>, vector<1x256xf32>
    %31 = vector.broadcast %30 : vector<1x256xf32> to vector<4x256xf32>
    %32 = arith.mulf %31, %28 : vector<4x256xf32>
    %33 = vector.broadcast %29 : vector<4x1xf32> to vector<4x256xf32>
    %34 = arith.mulf %33, %32 : vector<4x256xf32>
    %35 = arith.addf %19, %34 : vector<4x256xf32>
    %c0_25 = arith.constant 0 : index
    %c96 = arith.constant 96 : index
    %36 = vector.load %arg8[%c0_25, %c96] : memref<4x512xf32, #tpu.memory_space<vmem>>, vector<4x256xf32>
    %c0_26 = arith.constant 0 : index
    %c2 = arith.constant 2 : index
    %37 = vector.load %arg3[%c0_26, %c2] : memref<4x25xf32, #tpu.memory_space<vmem>>, vector<4x1xf32>
    %c2_27 = arith.constant 2 : index
    %c0_28 = arith.constant 0 : index
    %38 = vector.load %arg5[%c2_27, %c0_28] : memref<25x256xf32, #tpu.memory_space<vmem>>, vector<1x256xf32>
    %39 = vector.broadcast %38 : vector<1x256xf32> to vector<4x256xf32>
    %40 = arith.mulf %39, %36 : vector<4x256xf32>
    %41 = vector.broadcast %37 : vector<4x1xf32> to vector<4x256xf32>
    %42 = arith.mulf %41, %40 : vector<4x256xf32>
    %43 = arith.addf %27, %42 : vector<4x256xf32>
    %c0_29 = arith.constant 0 : index
    %c97 = arith.constant 97 : index
    %44 = vector.load %arg8[%c0_29, %c97] : memref<4x512xf32, #tpu.memory_space<vmem>>, vector<4x256xf32>
    %c0_30 = arith.constant 0 : index
    %c3 = arith.constant 3 : index
    %45 = vector.load %arg3[%c0_30, %c3] : memref<4x25xf32, #tpu.memory_space<vmem>>, vector<4x1xf32>
    %c3_31 = arith.constant 3 : index
    %c0_32 = arith.constant 0 : index
    %46 = vector.load %arg5[%c3_31, %c0_32] : memref<25x256xf32, #tpu.memory_space<vmem>>, vector<1x256xf32>
    %47 = vector.broadcast %46 : vector<1x256xf32> to vector<4x256xf32>
    %48 = arith.mulf %47, %44 : vector<4x256xf32>
    %49 = vector.broadcast %45 : vector<4x1xf32> to vector<4x256xf32>
    %50 = arith.mulf %49, %48 : vector<4x256xf32>
    %51 = arith.addf %35, %50 : vector<4x256xf32>
    %c0_33 = arith.constant 0 : index
    %c98 = arith.constant 98 : index
    %52 = vector.load %arg8[%c0_33, %c98] : memref<4x512xf32, #tpu.memory_space<vmem>>, vector<4x256xf32>
    %c0_34 = arith.constant 0 : index
    %c4 = arith.constant 4 : index
    %53 = vector.load %arg3[%c0_34, %c4] : memref<4x25xf32, #tpu.memory_space<vmem>>, vector<4x1xf32>
    %c4_35 = arith.constant 4 : index
    %c0_36 = arith.constant 0 : index
    %54 = vector.load %arg5[%c4_35, %c0_36] : memref<25x256xf32, #tpu.memory_space<vmem>>, vector<1x256xf32>
    %55 = vector.broadcast %54 : vector<1x256xf32> to vector<4x256xf32>
    %56 = arith.mulf %55, %52 : vector<4x256xf32>
    %57 = vector.broadcast %53 : vector<4x1xf32> to vector<4x256xf32>
    %58 = arith.mulf %57, %56 : vector<4x256xf32>
    %59 = arith.addf %43, %58 : vector<4x256xf32>
    %c0_37 = arith.constant 0 : index
    %c110 = arith.constant 110 : index
    %60 = vector.load %arg8[%c0_37, %c110] : memref<4x512xf32, #tpu.memory_space<vmem>>, vector<4x256xf32>
    %c0_38 = arith.constant 0 : index
    %c5 = arith.constant 5 : index
    %61 = vector.load %arg3[%c0_38, %c5] : memref<4x25xf32, #tpu.memory_space<vmem>>, vector<4x1xf32>
    %c5_39 = arith.constant 5 : index
    %c0_40 = arith.constant 0 : index
    %62 = vector.load %arg5[%c5_39, %c0_40] : memref<25x256xf32, #tpu.memory_space<vmem>>, vector<1x256xf32>
    %63 = vector.broadcast %62 : vector<1x256xf32> to vector<4x256xf32>
    %64 = arith.mulf %63, %60 : vector<4x256xf32>
    %65 = vector.broadcast %61 : vector<4x1xf32> to vector<4x256xf32>
    %66 = arith.mulf %65, %64 : vector<4x256xf32>
    %67 = arith.addf %51, %66 : vector<4x256xf32>
    %c0_41 = arith.constant 0 : index
    %c111 = arith.constant 111 : index
    %68 = vector.load %arg8[%c0_41, %c111] : memref<4x512xf32, #tpu.memory_space<vmem>>, vector<4x256xf32>
    %c0_42 = arith.constant 0 : index
    %c6 = arith.constant 6 : index
    %69 = vector.load %arg3[%c0_42, %c6] : memref<4x25xf32, #tpu.memory_space<vmem>>, vector<4x1xf32>
    %c6_43 = arith.constant 6 : index
    %c0_44 = arith.constant 0 : index
    %70 = vector.load %arg5[%c6_43, %c0_44] : memref<25x256xf32, #tpu.memory_space<vmem>>, vector<1x256xf32>
    %71 = vector.broadcast %70 : vector<1x256xf32> to vector<4x256xf32>
    %72 = arith.mulf %71, %68 : vector<4x256xf32>
    %73 = vector.broadcast %69 : vector<4x1xf32> to vector<4x256xf32>
    %74 = arith.mulf %73, %72 : vector<4x256xf32>
    %75 = arith.addf %59, %74 : vector<4x256xf32>
    %c0_45 = arith.constant 0 : index
    %c112 = arith.constant 112 : index
    %76 = vector.load %arg8[%c0_45, %c112] : memref<4x512xf32, #tpu.memory_space<vmem>>, vector<4x256xf32>
    %c0_46 = arith.constant 0 : index
    %c7 = arith.constant 7 : index
    %77 = vector.load %arg3[%c0_46, %c7] : memref<4x25xf32, #tpu.memory_space<vmem>>, vector<4x1xf32>
    %c7_47 = arith.constant 7 : index
    %c0_48 = arith.constant 0 : index
    %78 = vector.load %arg5[%c7_47, %c0_48] : memref<25x256xf32, #tpu.memory_space<vmem>>, vector<1x256xf32>
    %79 = vector.broadcast %78 : vector<1x256xf32> to vector<4x256xf32>
    %80 = arith.mulf %79, %76 : vector<4x256xf32>
    %81 = vector.broadcast %77 : vector<4x1xf32> to vector<4x256xf32>
    %82 = arith.mulf %81, %80 : vector<4x256xf32>
    %83 = arith.addf %67, %82 : vector<4x256xf32>
    %c0_49 = arith.constant 0 : index
    %c113 = arith.constant 113 : index
    %84 = vector.load %arg8[%c0_49, %c113] : memref<4x512xf32, #tpu.memory_space<vmem>>, vector<4x256xf32>
    %c0_50 = arith.constant 0 : index
    %c8 = arith.constant 8 : index
    %85 = vector.load %arg3[%c0_50, %c8] : memref<4x25xf32, #tpu.memory_space<vmem>>, vector<4x1xf32>
    %c8_51 = arith.constant 8 : index
    %c0_52 = arith.constant 0 : index
    %86 = vector.load %arg5[%c8_51, %c0_52] : memref<25x256xf32, #tpu.memory_space<vmem>>, vector<1x256xf32>
    %87 = vector.broadcast %86 : vector<1x256xf32> to vector<4x256xf32>
    %88 = arith.mulf %87, %84 : vector<4x256xf32>
    %89 = vector.broadcast %85 : vector<4x1xf32> to vector<4x256xf32>
    %90 = arith.mulf %89, %88 : vector<4x256xf32>
    %91 = arith.addf %75, %90 : vector<4x256xf32>
    %c0_53 = arith.constant 0 : index
    %c114 = arith.constant 114 : index
    %92 = vector.load %arg8[%c0_53, %c114] : memref<4x512xf32, #tpu.memory_space<vmem>>, vector<4x256xf32>
    %c0_54 = arith.constant 0 : index
    %c9 = arith.constant 9 : index
    %93 = vector.load %arg3[%c0_54, %c9] : memref<4x25xf32, #tpu.memory_space<vmem>>, vector<4x1xf32>
    %c9_55 = arith.constant 9 : index
    %c0_56 = arith.constant 0 : index
    %94 = vector.load %arg5[%c9_55, %c0_56] : memref<25x256xf32, #tpu.memory_space<vmem>>, vector<1x256xf32>
    %95 = vector.broadcast %94 : vector<1x256xf32> to vector<4x256xf32>
    %96 = arith.mulf %95, %92 : vector<4x256xf32>
    %97 = vector.broadcast %93 : vector<4x1xf32> to vector<4x256xf32>
    %98 = arith.mulf %97, %96 : vector<4x256xf32>
    %99 = arith.addf %83, %98 : vector<4x256xf32>
    %c0_57 = arith.constant 0 : index
    %c126 = arith.constant 126 : index
    %100 = vector.load %arg8[%c0_57, %c126] : memref<4x512xf32, #tpu.memory_space<vmem>>, vector<4x256xf32>
    %c0_58 = arith.constant 0 : index
    %c10 = arith.constant 10 : index
    %101 = vector.load %arg3[%c0_58, %c10] : memref<4x25xf32, #tpu.memory_space<vmem>>, vector<4x1xf32>
    %c10_59 = arith.constant 10 : index
    %c0_60 = arith.constant 0 : index
    %102 = vector.load %arg5[%c10_59, %c0_60] : memref<25x256xf32, #tpu.memory_space<vmem>>, vector<1x256xf32>
    %103 = vector.broadcast %102 : vector<1x256xf32> to vector<4x256xf32>
    %104 = arith.mulf %103, %100 : vector<4x256xf32>
    %105 = vector.broadcast %101 : vector<4x1xf32> to vector<4x256xf32>
    %106 = arith.mulf %105, %104 : vector<4x256xf32>
    %107 = arith.addf %91, %106 : vector<4x256xf32>
    %c0_61 = arith.constant 0 : index
    %c127 = arith.constant 127 : index
    %108 = vector.load %arg8[%c0_61, %c127] : memref<4x512xf32, #tpu.memory_space<vmem>>, vector<4x256xf32>
    %c0_62 = arith.constant 0 : index
    %c11 = arith.constant 11 : index
    %109 = vector.load %arg3[%c0_62, %c11] : memref<4x25xf32, #tpu.memory_space<vmem>>, vector<4x1xf32>
    %c11_63 = arith.constant 11 : index
    %c0_64 = arith.constant 0 : index
    %110 = vector.load %arg5[%c11_63, %c0_64] : memref<25x256xf32, #tpu.memory_space<vmem>>, vector<1x256xf32>
    %111 = vector.broadcast %110 : vector<1x256xf32> to vector<4x256xf32>
    %112 = arith.mulf %111, %108 : vector<4x256xf32>
    %113 = vector.broadcast %109 : vector<4x1xf32> to vector<4x256xf32>
    %114 = arith.mulf %113, %112 : vector<4x256xf32>
    %115 = arith.addf %99, %114 : vector<4x256xf32>
    %c0_65 = arith.constant 0 : index
    %c128_66 = arith.constant 128 : index
    %116 = vector.load %arg8[%c0_65, %c128_66] : memref<4x512xf32, #tpu.memory_space<vmem>>, vector<4x256xf32>
    %c0_67 = arith.constant 0 : index
    %c12 = arith.constant 12 : index
    %117 = vector.load %arg3[%c0_67, %c12] : memref<4x25xf32, #tpu.memory_space<vmem>>, vector<4x1xf32>
    %c12_68 = arith.constant 12 : index
    %c0_69 = arith.constant 0 : index
    %118 = vector.load %arg5[%c12_68, %c0_69] : memref<25x256xf32, #tpu.memory_space<vmem>>, vector<1x256xf32>
    %119 = vector.broadcast %118 : vector<1x256xf32> to vector<4x256xf32>
    %120 = arith.mulf %119, %116 : vector<4x256xf32>
    %121 = vector.broadcast %117 : vector<4x1xf32> to vector<4x256xf32>
    %122 = arith.mulf %121, %120 : vector<4x256xf32>
    %123 = arith.addf %107, %122 : vector<4x256xf32>
    %c0_70 = arith.constant 0 : index
    %c129 = arith.constant 129 : index
    %124 = vector.load %arg8[%c0_70, %c129] : memref<4x512xf32, #tpu.memory_space<vmem>>, vector<4x256xf32>
    %c0_71 = arith.constant 0 : index
    %c13 = arith.constant 13 : index
    %125 = vector.load %arg3[%c0_71, %c13] : memref<4x25xf32, #tpu.memory_space<vmem>>, vector<4x1xf32>
    %c13_72 = arith.constant 13 : index
    %c0_73 = arith.constant 0 : index
    %126 = vector.load %arg5[%c13_72, %c0_73] : memref<25x256xf32, #tpu.memory_space<vmem>>, vector<1x256xf32>
    %127 = vector.broadcast %126 : vector<1x256xf32> to vector<4x256xf32>
    %128 = arith.mulf %127, %124 : vector<4x256xf32>
    %129 = vector.broadcast %125 : vector<4x1xf32> to vector<4x256xf32>
    %130 = arith.mulf %129, %128 : vector<4x256xf32>
    %131 = arith.addf %115, %130 : vector<4x256xf32>
    %c0_74 = arith.constant 0 : index
    %c130 = arith.constant 130 : index
    %132 = vector.load %arg8[%c0_74, %c130] : memref<4x512xf32, #tpu.memory_space<vmem>>, vector<4x256xf32>
    %c0_75 = arith.constant 0 : index
    %c14 = arith.constant 14 : index
    %133 = vector.load %arg3[%c0_75, %c14] : memref<4x25xf32, #tpu.memory_space<vmem>>, vector<4x1xf32>
    %c14_76 = arith.constant 14 : index
    %c0_77 = arith.constant 0 : index
    %134 = vector.load %arg5[%c14_76, %c0_77] : memref<25x256xf32, #tpu.memory_space<vmem>>, vector<1x256xf32>
    %135 = vector.broadcast %134 : vector<1x256xf32> to vector<4x256xf32>
    %136 = arith.mulf %135, %132 : vector<4x256xf32>
    %137 = vector.broadcast %133 : vector<4x1xf32> to vector<4x256xf32>
    %138 = arith.mulf %137, %136 : vector<4x256xf32>
    %139 = arith.addf %123, %138 : vector<4x256xf32>
    %c0_78 = arith.constant 0 : index
    %c142 = arith.constant 142 : index
    %140 = vector.load %arg8[%c0_78, %c142] : memref<4x512xf32, #tpu.memory_space<vmem>>, vector<4x256xf32>
    %c0_79 = arith.constant 0 : index
    %c15 = arith.constant 15 : index
    %141 = vector.load %arg3[%c0_79, %c15] : memref<4x25xf32, #tpu.memory_space<vmem>>, vector<4x1xf32>
    %c15_80 = arith.constant 15 : index
    %c0_81 = arith.constant 0 : index
    %142 = vector.load %arg5[%c15_80, %c0_81] : memref<25x256xf32, #tpu.memory_space<vmem>>, vector<1x256xf32>
    %143 = vector.broadcast %142 : vector<1x256xf32> to vector<4x256xf32>
    %144 = arith.mulf %143, %140 : vector<4x256xf32>
    %145 = vector.broadcast %141 : vector<4x1xf32> to vector<4x256xf32>
    %146 = arith.mulf %145, %144 : vector<4x256xf32>
    %147 = arith.addf %131, %146 : vector<4x256xf32>
    %c0_82 = arith.constant 0 : index
    %c143 = arith.constant 143 : index
    %148 = vector.load %arg8[%c0_82, %c143] : memref<4x512xf32, #tpu.memory_space<vmem>>, vector<4x256xf32>
    %c0_83 = arith.constant 0 : index
    %c16 = arith.constant 16 : index
    %149 = vector.load %arg3[%c0_83, %c16] : memref<4x25xf32, #tpu.memory_space<vmem>>, vector<4x1xf32>
    %c16_84 = arith.constant 16 : index
    %c0_85 = arith.constant 0 : index
    %150 = vector.load %arg5[%c16_84, %c0_85] : memref<25x256xf32, #tpu.memory_space<vmem>>, vector<1x256xf32>
    %151 = vector.broadcast %150 : vector<1x256xf32> to vector<4x256xf32>
    %152 = arith.mulf %151, %148 : vector<4x256xf32>
    %153 = vector.broadcast %149 : vector<4x1xf32> to vector<4x256xf32>
    %154 = arith.mulf %153, %152 : vector<4x256xf32>
    %155 = arith.addf %139, %154 : vector<4x256xf32>
    %c0_86 = arith.constant 0 : index
    %c144 = arith.constant 144 : index
    %156 = vector.load %arg8[%c0_86, %c144] : memref<4x512xf32, #tpu.memory_space<vmem>>, vector<4x256xf32>
    %c0_87 = arith.constant 0 : index
    %c17 = arith.constant 17 : index
    %157 = vector.load %arg3[%c0_87, %c17] : memref<4x25xf32, #tpu.memory_space<vmem>>, vector<4x1xf32>
    %c17_88 = arith.constant 17 : index
    %c0_89 = arith.constant 0 : index
    %158 = vector.load %arg5[%c17_88, %c0_89] : memref<25x256xf32, #tpu.memory_space<vmem>>, vector<1x256xf32>
    %159 = vector.broadcast %158 : vector<1x256xf32> to vector<4x256xf32>
    %160 = arith.mulf %159, %156 : vector<4x256xf32>
    %161 = vector.broadcast %157 : vector<4x1xf32> to vector<4x256xf32>
    %162 = arith.mulf %161, %160 : vector<4x256xf32>
    %163 = arith.addf %147, %162 : vector<4x256xf32>
    %c0_90 = arith.constant 0 : index
    %c145 = arith.constant 145 : index
    %164 = vector.load %arg8[%c0_90, %c145] : memref<4x512xf32, #tpu.memory_space<vmem>>, vector<4x256xf32>
    %c0_91 = arith.constant 0 : index
    %c18 = arith.constant 18 : index
    %165 = vector.load %arg3[%c0_91, %c18] : memref<4x25xf32, #tpu.memory_space<vmem>>, vector<4x1xf32>
    %c18_92 = arith.constant 18 : index
    %c0_93 = arith.constant 0 : index
    %166 = vector.load %arg5[%c18_92, %c0_93] : memref<25x256xf32, #tpu.memory_space<vmem>>, vector<1x256xf32>
    %167 = vector.broadcast %166 : vector<1x256xf32> to vector<4x256xf32>
    %168 = arith.mulf %167, %164 : vector<4x256xf32>
    %169 = vector.broadcast %165 : vector<4x1xf32> to vector<4x256xf32>
    %170 = arith.mulf %169, %168 : vector<4x256xf32>
    %171 = arith.addf %155, %170 : vector<4x256xf32>
    %c0_94 = arith.constant 0 : index
    %c146 = arith.constant 146 : index
    %172 = vector.load %arg8[%c0_94, %c146] : memref<4x512xf32, #tpu.memory_space<vmem>>, vector<4x256xf32>
    %c0_95 = arith.constant 0 : index
    %c19 = arith.constant 19 : index
    %173 = vector.load %arg3[%c0_95, %c19] : memref<4x25xf32, #tpu.memory_space<vmem>>, vector<4x1xf32>
    %c19_96 = arith.constant 19 : index
    %c0_97 = arith.constant 0 : index
    %174 = vector.load %arg5[%c19_96, %c0_97] : memref<25x256xf32, #tpu.memory_space<vmem>>, vector<1x256xf32>
    %175 = vector.broadcast %174 : vector<1x256xf32> to vector<4x256xf32>
    %176 = arith.mulf %175, %172 : vector<4x256xf32>
    %177 = vector.broadcast %173 : vector<4x1xf32> to vector<4x256xf32>
    %178 = arith.mulf %177, %176 : vector<4x256xf32>
    %179 = arith.addf %163, %178 : vector<4x256xf32>
    %c0_98 = arith.constant 0 : index
    %c158 = arith.constant 158 : index
    %180 = vector.load %arg8[%c0_98, %c158] : memref<4x512xf32, #tpu.memory_space<vmem>>, vector<4x256xf32>
    %c0_99 = arith.constant 0 : index
    %c20 = arith.constant 20 : index
    %181 = vector.load %arg3[%c0_99, %c20] : memref<4x25xf32, #tpu.memory_space<vmem>>, vector<4x1xf32>
    %c20_100 = arith.constant 20 : index
    %c0_101 = arith.constant 0 : index
    %182 = vector.load %arg5[%c20_100, %c0_101] : memref<25x256xf32, #tpu.memory_space<vmem>>, vector<1x256xf32>
    %183 = vector.broadcast %182 : vector<1x256xf32> to vector<4x256xf32>
    %184 = arith.mulf %183, %180 : vector<4x256xf32>
    %185 = vector.broadcast %181 : vector<4x1xf32> to vector<4x256xf32>
    %186 = arith.mulf %185, %184 : vector<4x256xf32>
    %187 = arith.addf %171, %186 : vector<4x256xf32>
    %c0_102 = arith.constant 0 : index
    %c159 = arith.constant 159 : index
    %188 = vector.load %arg8[%c0_102, %c159] : memref<4x512xf32, #tpu.memory_space<vmem>>, vector<4x256xf32>
    %c0_103 = arith.constant 0 : index
    %c21 = arith.constant 21 : index
    %189 = vector.load %arg3[%c0_103, %c21] : memref<4x25xf32, #tpu.memory_space<vmem>>, vector<4x1xf32>
    %c21_104 = arith.constant 21 : index
    %c0_105 = arith.constant 0 : index
    %190 = vector.load %arg5[%c21_104, %c0_105] : memref<25x256xf32, #tpu.memory_space<vmem>>, vector<1x256xf32>
    %191 = vector.broadcast %190 : vector<1x256xf32> to vector<4x256xf32>
    %192 = arith.mulf %191, %188 : vector<4x256xf32>
    %193 = vector.broadcast %189 : vector<4x1xf32> to vector<4x256xf32>
    %194 = arith.mulf %193, %192 : vector<4x256xf32>
    %195 = arith.addf %179, %194 : vector<4x256xf32>
    %c0_106 = arith.constant 0 : index
    %c160 = arith.constant 160 : index
    %196 = vector.load %arg8[%c0_106, %c160] : memref<4x512xf32, #tpu.memory_space<vmem>>, vector<4x256xf32>
    %c0_107 = arith.constant 0 : index
    %c22 = arith.constant 22 : index
    %197 = vector.load %arg3[%c0_107, %c22] : memref<4x25xf32, #tpu.memory_space<vmem>>, vector<4x1xf32>
    %c22_108 = arith.constant 22 : index
    %c0_109 = arith.constant 0 : index
    %198 = vector.load %arg5[%c22_108, %c0_109] : memref<25x256xf32, #tpu.memory_space<vmem>>, vector<1x256xf32>
    %199 = vector.broadcast %198 : vector<1x256xf32> to vector<4x256xf32>
    %200 = arith.mulf %199, %196 : vector<4x256xf32>
    %201 = vector.broadcast %197 : vector<4x1xf32> to vector<4x256xf32>
    %202 = arith.mulf %201, %200 : vector<4x256xf32>
    %203 = arith.addf %187, %202 : vector<4x256xf32>
    %c0_110 = arith.constant 0 : index
    %c161 = arith.constant 161 : index
    %204 = vector.load %arg8[%c0_110, %c161] : memref<4x512xf32, #tpu.memory_space<vmem>>, vector<4x256xf32>
    %c0_111 = arith.constant 0 : index
    %c23 = arith.constant 23 : index
    %205 = vector.load %arg3[%c0_111, %c23] : memref<4x25xf32, #tpu.memory_space<vmem>>, vector<4x1xf32>
    %c23_112 = arith.constant 23 : index
    %c0_113 = arith.constant 0 : index
    %206 = vector.load %arg5[%c23_112, %c0_113] : memref<25x256xf32, #tpu.memory_space<vmem>>, vector<1x256xf32>
    %207 = vector.broadcast %206 : vector<1x256xf32> to vector<4x256xf32>
    %208 = arith.mulf %207, %204 : vector<4x256xf32>
    %209 = vector.broadcast %205 : vector<4x1xf32> to vector<4x256xf32>
    %210 = arith.mulf %209, %208 : vector<4x256xf32>
    %211 = arith.addf %195, %210 : vector<4x256xf32>
    %c0_114 = arith.constant 0 : index
    %c162 = arith.constant 162 : index
    %212 = vector.load %arg8[%c0_114, %c162] : memref<4x512xf32, #tpu.memory_space<vmem>>, vector<4x256xf32>
    %c0_115 = arith.constant 0 : index
    %c24 = arith.constant 24 : index
    %213 = vector.load %arg3[%c0_115, %c24] : memref<4x25xf32, #tpu.memory_space<vmem>>, vector<4x1xf32>
    %c24_116 = arith.constant 24 : index
    %c0_117 = arith.constant 0 : index
    %214 = vector.load %arg5[%c24_116, %c0_117] : memref<25x256xf32, #tpu.memory_space<vmem>>, vector<1x256xf32>
    %215 = vector.broadcast %214 : vector<1x256xf32> to vector<4x256xf32>
    %216 = arith.mulf %215, %212 : vector<4x256xf32>
    %217 = vector.broadcast %213 : vector<4x1xf32> to vector<4x256xf32>
    %218 = arith.mulf %217, %216 : vector<4x256xf32>
    %219 = arith.addf %203, %218 : vector<4x256xf32>
    %220 = arith.addf %219, %211 : vector<4x256xf32>
    %c0_118 = arith.constant 0 : index
    %c0_119 = arith.constant 0 : index
    %221 = vector.load %arg4[%c0_118, %c0_119] : memref<4x1xf32, #tpu.memory_space<vmem>>, vector<4x1xf32>
    %222 = vector.broadcast %221 : vector<4x1xf32> to vector<4x256xf32>
    %223 = arith.addf %220, %222 : vector<4x256xf32>
    %224 = arith.negf %223 : vector<4x256xf32>
    %225 = math.exp %224 : vector<4x256xf32>
    %cst_120 = arith.constant 1.000000e+00 : f32
    %226 = vector.broadcast %cst_120 : f32 to vector<4x256xf32>
    %227 = arith.addf %226, %225 : vector<4x256xf32>
    %228 = arith.divf %226, %227 : vector<4x256xf32>
    %229 = arith.mulf %223, %228 : vector<4x256xf32>
    %c4_121 = arith.constant 4 : index
    %c0_122 = arith.constant 0 : index
    %230 = vector.load %arg7[%c4_121, %c0_122] : memref<8x256xf32, #tpu.memory_space<vmem>>, vector<4x256xf32>
    tpu.vector_store %arg7[%c4_121, %c0_122], %229 {strides = array<i32>} : memref<8x256xf32, #tpu.memory_space<vmem>>, vector<4x256xf32>,
    return
  }
  func.func @transform_0(%arg0: i32) -> (i32, i32) {
    %c0_i32 = arith.constant 0 : i32
    %c0_i32_0 = arith.constant 0 : i32
    %c0_i32_1 = arith.constant 0 : i32
    return %c0_i32, %c0_i32_0 : i32, i32
  }
  func.func @transform_1(%arg0: i32) -> (i32, i32) {
    %c0_i32 = arith.constant 0 : i32
    %c0_i32_0 = arith.constant 0 : i32
    %c0_i32_1 = arith.constant 0 : i32
    return %c0_i32, %c0_i32_0 : i32, i32
  }
  func.func @transform_2(%arg0: i32) -> (i32, i32) {
    %c0_i32 = arith.constant 0 : i32
    %c0_i32_0 = arith.constant 0 : i32
    %c0_i32_1 = arith.constant 0 : i32
    return %c0_i32, %c0_i32_0 : i32, i32
  }
  func.func @transform_3(%arg0: i32) -> (i32, i32) {
    %c0_i32 = arith.constant 0 : i32
    %c0_i32_0 = arith.constant 0 : i32
    %c0_i32_1 = arith.constant 0 : i32
    return %c0_i32, %c0_i32_0 : i32, i32
  }
  func.func @transform_4(%arg0: i32) -> (i32, i32) {
    %c0_i32 = arith.constant 0 : i32
    %c0_i32_0 = arith.constant 0 : i32
    %c0_i32_1 = arith.constant 0 : i32
    return %c0_i32, %c0_i32_0 : i32, i32
  }
  func.func @transform_5(%arg0: i32) -> (i32, i32) {
    %c0_i32 = arith.constant 0 : i32
    %c0_i32_0 = arith.constant 0 : i32
    return %c0_i32, %arg0 : i32, i32
  }
  func.func @transform_6(%arg0: i32) -> (i32, i32) {
    %c0_i32 = arith.constant 0 : i32
    %c0_i32_0 = arith.constant 0 : i32
    return %c0_i32, %arg0 : i32, i32
  }
}

</mosaic_0001>

<llo_original>
// kernel: tpu_custom_call.1
$region0: #{tpu_custom_call.1}
  #allocation0 [shape = 'u32[]', space=smem, size = 0x4, offset = 0x4, fixed_abs, tag = 'smem constant byte address 0x4 - core index']
  #allocation1 [shape = 'u32[144,128]{1,0:T(1,128)}', space=vmem, size = 0x12000, scoped, tag = 'internal scratch']
  #allocation2 [shape = 'f32[4,512]{1,0:T(4,128)}', space=vmem, size = 0x2000, scoped, tag = 'scratch operand']
  %s0 = inlined_call_operand.vmem [shape: f32[4,4], index: 0, kind: input, shape index: {}]
  %s1 = inlined_call_operand.vmem [shape: f32[4,1], index: 1, kind: input, shape index: {}]
  %s2 = inlined_call_operand.vmem [shape: f32[4,25], index: 2, kind: input, shape index: {}]
  %s3 = inlined_call_operand.vmem [shape: f32[4,1], index: 3, kind: input, shape index: {}]
  %s4 = inlined_call_operand.hbm [shape: f32[25,256], index: 4, kind: input, shape index: {}]
  %s5 = inlined_call_operand.vmem [shape: f32[4,512], index: 5, kind: input, shape index: {}]
  %s6 = inlined_call_operand.hbm [shape: f32[8,512], index: 6, kind: output, shape index: {}]
  %s7 = sld [smem:[#allocation0]]
  $region61: #{tpu_custom_call.1} parent=0
    _
  %s9 = ssub.s32 1, %s7
  %s10 = scalar_select 0, %s9, %s7
  $region1: #{tpu_custom_call.1} parent=0
    #allocation3 [shape = 'u8[32768]{0}', space=vmem, size = 0x8000, scoped, tag = 'input window, operand 4, single buffered']
    #allocation4 [shape = 's32[2]{0}', space=sflag, size = 0x8, scoped, tag = 'scoped memory for tpu_custom_call.1']
    #allocation5 [shape = 's32[2]{0}', space=sflag, size = 0x8, scoped, tag = 'scoped memory for tpu_custom_call.1']
    #allocation6 [shape = 'u8[16384]{0}', space=vmem, size = 0x4000, scoped, tag = 'output window, operand 0']
    %11 = vsyncpa [#allocation4], 0
    %12 = vsyncpa [#allocation5], 0
    %s13 = scalar_lea.sflag [#allocation5], 1
    %14 = vsyncpa %s13, 0
    loop: start=0, step=1, limit=4
    $region2: #{tpu_custom_call.1} parent=1 // loop_pre_header
      _
    $region3: #{tpu_custom_call.1} parent=1 // loop_header
      %s16 = sphi 0, %s20
      %p17 = scmp.ge.s32.totalorder %s16, 4
      %s24 = sphi 0, %s24
      %s26 = sphi 0, %s24
      %s27 = sphi 0, %s26
      %s41 = sphi 0, %s27
      %s45 = sphi 0, %s45
      %s47 = sphi 0, %s45
      %s48 = sphi 0, %s47
      %s62 = sphi 0, %s48
      %s66 = sphi 0, %s66
      %s68 = sphi 0, %s66
      %s69 = sphi 0, %s68
      %s83 = sphi 0, %s69
      %s87 = sphi 0, %s87
      %s89 = sphi 0, %s87
      %s90 = sphi 0, %s89
      %s104 = sphi 0, %s90
      %s108 = sphi 0, %s108
      %s110 = sphi 0, %s108
      %s111 = sphi 0, %s110
      %s125 = sphi 0, %s111
      %s131 = sphi 0, %s133
      %s134 = sphi 0, %s131
      %s135 = sphi 0, %s134
      %s151 = sphi 0, %s135
      %s157 = sphi 0, %s159
      %s160 = sphi 0, %s157
      %s161 = sphi 0, %s160
      %s177 = sphi 0, %s161
    $region4: #{tpu_custom_call.1} parent=1 // loop_header_branch
      %19 = sbr.rel (%p17) target = $region8
    $region5: #{tpu_custom_call.1} parent=1 // loop_body
      %s21 = ssub.s32 %s16, 1
      %s22 = ssub.s32 %s16, 2
      %s23 = sadd.s32 %s16, 1
      %s25 = sadd.s32 %s24, 1
      %p28 = scmp.eq.s32.totalorder %s16, 1
      %p29 = scmp.ne.s32.totalorder %s24, %s26
      %p30 = scmp.eq.s32.totalorder %s16, 0
      %p31 = por %p29, %p30
      %p32 = scmp.ne.s32.totalorder %s24, %s26
      %p33 = scmp.eq.s32.totalorder %s21, 1
      %p34 = por %p32, %p33
      %p35 = scmp.ne.s32.totalorder %s26, %s27
      %p36 = scmp.eq.s32.totalorder %s21, 0
      %p37 = por %p35, %p36
      %p38 = scmp.ne.s32.totalorder %s26, %s27
      %p39 = scmp.eq.s32.totalorder %s22, 1
      %p40 = por %p38, %p39
      %p42 = scmp.ne.s32.totalorder %s27, %s41
      %p43 = scmp.eq.s32.totalorder %s22, 0
      %p44 = por %p42, %p43
      %s46 = sadd.s32 %s45, 1
      %p49 = scmp.eq.s32.totalorder %s16, 1
      %p50 = scmp.ne.s32.totalorder %s45, %s47
      %p51 = scmp.eq.s32.totalorder %s16, 0
      %p52 = por %p50, %p51
      %p53 = scmp.ne.s32.totalorder %s45, %s47
      %p54 = scmp.eq.s32.totalorder %s21, 1
      %p55 = por %p53, %p54
      %p56 = scmp.ne.s32.totalorder %s47, %s48
      %p57 = scmp.eq.s32.totalorder %s21, 0
      %p58 = por %p56, %p57
      %p59 = scmp.ne.s32.totalorder %s47, %s48
      %p60 = scmp.eq.s32.totalorder %s22, 1
      %p61 = por %p59, %p60
      %p63 = scmp.ne.s32.totalorder %s48, %s62
      %p64 = scmp.eq.s32.totalorder %s22, 0
      %p65 = por %p63, %p64
      %s67 = sadd.s32 %s66, 1
      %p70 = scmp.eq.s32.totalorder %s16, 1
      %p71 = scmp.ne.s32.totalorder %s66, %s68
      %p72 = scmp.eq.s32.totalorder %s16, 0
      %p73 = por %p71, %p72
      %p74 = scmp.ne.s32.totalorder %s66, %s68
      %p75 = scmp.eq.s32.totalorder %s21, 1
      %p76 = por %p74, %p75
      %p77 = scmp.ne.s32.totalorder %s68, %s69
      %p78 = scmp.eq.s32.totalorder %s21, 0
      %p79 = por %p77, %p78
      %p80 = scmp.ne.s32.totalorder %s68, %s69
      %p81 = scmp.eq.s32.totalorder %s22, 1
      %p82 = por %p80, %p81
      %p84 = scmp.ne.s32.totalorder %s69, %s83
      %p85 = scmp.eq.s32.totalorder %s22, 0
      %p86 = por %p84, %p85
      %s88 = sadd.s32 %s87, 1
      %p91 = scmp.eq.s32.totalorder %s16, 1
      %p92 = scmp.ne.s32.totalorder %s87, %s89
      %p93 = scmp.eq.s32.totalorder %s16, 0
      %p94 = por %p92, %p93
      %p95 = scmp.ne.s32.totalorder %s87, %s89
      %p96 = scmp.eq.s32.totalorder %s21, 1
      %p97 = por %p95, %p96
      %p98 = scmp.ne.s32.totalorder %s89, %s90
      %p99 = scmp.eq.s32.totalorder %s21, 0
      %p100 = por %p98, %p99
      %p101 = scmp.ne.s32.totalorder %s89, %s90
      %p102 = scmp.eq.s32.totalorder %s22, 1
      %p103 = por %p101, %p102
      %p105 = scmp.ne.s32.totalorder %s90, %s104
      %p106 = scmp.eq.s32.totalorder %s22, 0
      %p107 = por %p105, %p106
      %s109 = sadd.s32 %s108, 1
      %p112 = scmp.eq.s32.totalorder %s16, 1
      %p113 = scmp.ne.s32.totalorder %s108, %s110
      %p114 = scmp.eq.s32.totalorder %s16, 0
      %p115 = por %p113, %p114
      %p116 = scmp.ne.s32.totalorder %s108, %s110
      %p117 = scmp.eq.s32.totalorder %s21, 1
      %p118 = por %p116, %p117
      %p119 = scmp.ne.s32.totalorder %s110, %s111
      %p120 = scmp.eq.s32.totalorder %s21, 0
      %p121 = por %p119, %p120
      %p122 = scmp.ne.s32.totalorder %s110, %s111
      %p123 = scmp.eq.s32.totalorder %s22, 1
      %p124 = por %p122, %p123
      %p126 = scmp.ne.s32.totalorder %s111, %s125
      %p127 = scmp.eq.s32.totalorder %s22, 0
      %p128 = por %p126, %p127
      %s129 = ssub.s32 %s16, %s23
      %p130 = scmp.eq.s32.totalorder %s129, 0
      %s132 = sadd.s32 %s131, 1
      %s133 = scalar_select %p130, %s131, %s132
      %p136 = pneg %p130
      %p137 = scmp.eq.s32.totalorder %s16, 1
      %p138 = por %p136, %p137
      %p139 = scmp.ne.s32.totalorder %s131, %s134
      %p140 = scmp.eq.s32.totalorder %s16, 0
      %p141 = por %p139, %p140
      %p142 = scmp.ne.s32.totalorder %s131, %s134
      %p143 = scmp.eq.s32.totalorder %s21, 1
      %p144 = por %p142, %p143
      %p145 = scmp.ne.s32.totalorder %s134, %s135
      %p146 = scmp.eq.s32.totalorder %s21, 0
      %p147 = por %p145, %p146
      %p148 = scmp.ne.s32.totalorder %s134, %s135
      %p149 = scmp.eq.s32.totalorder %s22, 1
      %p150 = por %p148, %p149
      %p152 = scmp.ne.s32.totalorder %s135, %s151
      %p153 = scmp.eq.s32.totalorder %s22, 0
      %p154 = por %p152, %p153
      %s155 = ssub.s32 %s16, %s23
      %p156 = scmp.eq.s32.totalorder %s155, 0
      %s158 = sadd.s32 %s157, 1
      %s159 = scalar_select %p156, %s157, %s158
      %p162 = pneg %p156
      %p163 = scmp.eq.s32.totalorder %s16, 1
      %p164 = por %p162, %p163
      %p165 = scmp.ne.s32.totalorder %s157, %s160
      %p166 = scmp.eq.s32.totalorder %s16, 0
      %p167 = por %p165, %p166
      %p168 = scmp.ne.s32.totalorder %s157, %s160
      %p169 = scmp.eq.s32.totalorder %s21, 1
      %p170 = por %p168, %p169
      %p171 = scmp.ne.s32.totalorder %s160, %s161
      %p172 = scmp.eq.s32.totalorder %s21, 0
      %p173 = por %p171, %p172
      %p174 = scmp.ne.s32.totalorder %s160, %s161
      %p175 = scmp.eq.s32.totalorder %s22, 1
      %p176 = por %p174, %p175
      %p178 = scmp.ne.s32.totalorder %s161, %s177
      %p179 = scmp.eq.s32.totalorder %s22, 0
      %p180 = por %p178, %p179
      %p181 = scmp.le.s32.totalorder 1, %s16
      %p182 = scmp.lt.s32.totalorder %s16, 3
      %p183 = pnand %p181, %p182
      %p184 = pneg %p183
      // Predicated region
      $region9: #{tpu_custom_call.1} parent=5 // pred_check
        _
      $region10: #{tpu_custom_call.1} parent=5 // pred_check_branch
        %186 = sbr.rel (%p183) target = $region12
      $region11: #{tpu_custom_call.1} parent=5 // pred_region
        %s187 = ssub.s32 %s16, 1
        // Predicated region
        $region13: #{tpu_custom_call.1} parent=11 // pred_check
          %p188 = pneg %p37
        $region14: #{tpu_custom_call.1} parent=11 // pred_check_branch
          %190 = sbr.rel (%p188) target = $region16
        $region15: #{tpu_custom_call.1} parent=11 // pred_region
          _
        $region16: #{tpu_custom_call.1} parent=11 // pred_fallthru
          _
        // Predicated region
        $region17: #{tpu_custom_call.1} parent=11 // pred_check
          %p191 = pneg %p58
        $region18: #{tpu_custom_call.1} parent=11 // pred_check_branch
          %193 = sbr.rel (%p191) target = $region20
        $region19: #{tpu_custom_call.1} parent=11 // pred_region
          _
        $region20: #{tpu_custom_call.1} parent=11 // pred_fallthru
          _
        // Predicated region
        $region21: #{tpu_custom_call.1} parent=11 // pred_check
          %p194 = pneg %p79
        $region22: #{tpu_custom_call.1} parent=11 // pred_check_branch
          %196 = sbr.rel (%p194) target = $region24
        $region23: #{tpu_custom_call.1} parent=11 // pred_region
          _
        $region24: #{tpu_custom_call.1} parent=11 // pred_fallthru
          _
        // Predicated region
        $region25: #{tpu_custom_call.1} parent=11 // pred_check
          %p197 = pneg %p100
        $region26: #{tpu_custom_call.1} parent=11 // pred_check_branch
          %199 = sbr.rel (%p197) target = $region28
        $region27: #{tpu_custom_call.1} parent=11 // pred_region
          _
        $region28: #{tpu_custom_call.1} parent=11 // pred_fallthru
          _
        // Predicated region
        $region29: #{tpu_custom_call.1} parent=11 // pred_check
          %p200 = pneg %p121
        $region30: #{tpu_custom_call.1} parent=11 // pred_check_branch
          %202 = sbr.rel (%p200) target = $region32
        $region31: #{tpu_custom_call.1} parent=11 // pred_region
          %s204 = ssub.s32 1024, 1024
          %205 = vsyncadd [#allocation4], %s204
          %s206 = sshll.u32 [#allocation3], 4
          %s207 = int_to_ptr.vmem [resolvable:$true] %s206
          %212 = dma.hbm_to_vmem [thread:$0]  %s4, 1024, %s207, [#allocation4], 256, 256, 16
        $region32: #{tpu_custom_call.1} parent=11 // pred_fallthru
          _
      $region12: #{tpu_custom_call.1} parent=5 // pred_fallthru
        _
      %p213 = scmp.lt.s32.totalorder %s16, 2
      // Predicated region
      $region33: #{tpu_custom_call.1} parent=5 // pred_check
        %p214 = pneg %p213
      $region34: #{tpu_custom_call.1} parent=5 // pred_check_branch
        %216 = sbr.rel (%p214) target = $region36
      $region35: #{tpu_custom_call.1} parent=5 // pred_region
        // Predicated region
        $region37: #{tpu_custom_call.1} parent=35 // pred_check
          %p217 = pneg %p141
        $region38: #{tpu_custom_call.1} parent=35 // pred_check_branch
          %219 = sbr.rel (%p217) target = $region40
        $region39: #{tpu_custom_call.1} parent=35 // pred_region
          %s220 = smul.u32 2, %s16
          %p221 = scmp.lt.s32.totalorder %s220, 3
          %s222 = scalar_select %p221, %s220, 3
          %s223 = smul.addr %s222, 4
          %s224 = scalar_lea.vmem %s5, %s223
          %s225 = smul.u32 2, %s16
        $region40: #{tpu_custom_call.1} parent=35 // pred_fallthru
          _
      $region36: #{tpu_custom_call.1} parent=5 // pred_fallthru
        _
      %p226 = scmp.le.s32.totalorder 1, %s16
      %p227 = scmp.lt.s32.totalorder %s16, 3
      %p228 = pnand %p226, %p227
      %p229 = pneg %p228
      // Predicated region
      $region41: #{tpu_custom_call.1} parent=5 // pred_check
        _
      $region42: #{tpu_custom_call.1} parent=5 // pred_check_branch
        %231 = sbr.rel (%p228) target = $region44
      $region43: #{tpu_custom_call.1} parent=5 // pred_region
        %s232 = ssub.s32 %s16, 1
        // Predicated region
        $region45: #{tpu_custom_call.1} parent=43 // pred_check
          %p233 = pneg %p121
        $region46: #{tpu_custom_call.1} parent=43 // pred_check_branch
          %235 = sbr.rel (%p233) target = $region48
        $region47: #{tpu_custom_call.1} parent=43 // pred_region
          %236 = dma.done [#allocation4], 1024
        $region48: #{tpu_custom_call.1} parent=43 // pred_fallthru
          _
        %p237 = pneg %p37
        %p238 = pneg %p34
        %p239 = pneg %p58
        %p240 = pneg %p55
        %p241 = pneg %p79
        %p242 = pneg %p76
        %p243 = pneg %p100
        %p244 = pneg %p97
        %p245 = pneg %p121
        %p246 = pneg %p118
        %s247 = smul.u32 2, %s21
        %p248 = scmp.lt.s32.totalorder %s247, 3
        %s249 = scalar_select %p248, %s247, 3
        %s250 = smul.addr %s249, 4
        %s251 = scalar_lea.vmem %s5, %s250
        %p252 = pneg %p147
        %p253 = pneg %p144
        %p254 = pneg %p173
        %p255 = pneg %p170
        %s256 = sand.u32 %s160, 1
        %s257 = scalar_lea.sflag [#allocation5], %s256
        %s258 = sand.u32 %s160, 1
        %s259 = smul.addr %s258, 16
        %s260 = scalar_lea.vmem [#allocation6], %s259
        %s261 = smul.u32 2, %s21
        %p262 = scmp.lt.s32.totalorder %s261, 3
        %s263 = scalar_select %p262, %s261, 3
        %s264 = smul.addr %s263, 4
        %s265 = scalar_lea.vmem %s5, %s264
        %s266 = smul.u32 2, %s21
        %s267 = smul.u32 2, %s21
        %v268 = vld [vmem:[%s0] sm:$0xf]
        %v269 = vld [vmem:[%s265] sm:$0xff]
        %v270 = vld [vmem:[%s1] sm:$0xf]
        %272 = vset.pattern.permute.xlu0 0
        %273 = vperm.xlu0 %272, %v270
        %v274 = vpop.permute.xlu0 %273
        %v277 = vcombine.high %v269, %v269
        %vm278 = vcmask 31744
        %v280 = vsel %vm278, %v268, 0
        %vm282 = vcmask 1043456
        %v283 = vsel %vm282, %v269, 0
        %v285 = vsel %vm282, %v277, 0
        %287 = vmatprep.subr.mxu0 %v285
        %288 = vmatpush1.msra.mxu0 %v283
        %289 = vmatprep.subr.mxu0 0.0
        %290 = vmatpush1.msra.mxu0 0.0
        %291 = vmatprep.subr.mxu0 0.0
        %292 = vmatpush1.msra.mxu0 0.0
        %293 = vmatprep.subr.mxu0 0.0
        %294 = vmatpush1.msra.mxu0 0.0
        %295 = vmatprep.subr.mxu0 0.0
        %296 = vmatpush1.msra.mxu0 0.0
        %297 = vmatprep.subr.mxu0 0.0
        %298 = vmatpush1.msra.mxu0 0.0
        %299 = vmatprep.subr.mxu0 0.0
        %300 = vmatpush1.msra.mxu0 0.0
        %301 = vmatprep.subr.mxu0 0.0
        %302 = vmatpush1.msra.mxu0 0.0
        %303 = vmatprep.subr.mxu0 0.0
        %304 = vmatpush1.msra.mxu0 0.0
        %305 = vmatprep.subr.mxu0 0.0
        %306 = vmatpush1.msra.mxu0 0.0
        %307 = vmatprep.subr.mxu0 0.0
        %308 = vmatpush1.msra.mxu0 0.0
        %309 = vmatprep.subr.mxu0 0.0
        %310 = vmatpush1.msra.mxu0 0.0
        %311 = vmatprep.subr.mxu0 0.0
        %312 = vmatpush1.msra.mxu0 0.0
        %313 = vmatprep.subr.mxu0 0.0
        %314 = vmatpush1.msra.mxu0 0.0
        %315 = vmatprep.subr.mxu0 0.0
        %316 = vmatpush1.msra.mxu0 0.0
        %317 = vmatprep.subr.mxu0 0.0
        %318 = vmatpush1.msra.mxu0 0.0
        %319 = vmatprep.subr.mxu0 0.0
        %320 = vmatpush1.msra.mxu0 0.0
        %321 = vmatprep.subr.mxu0 0.0
        %322 = vmatpush1.msra.mxu0 0.0
        %323 = vmatprep.subr.mxu0 0.0
        %324 = vmatpush1.msra.mxu0 0.0
        %325 = vmatprep.subr.mxu0 0.0
        %326 = vmatpush1.msra.mxu0 0.0
        %327 = vmatprep.subr.mxu0 0.0
        %328 = vmatpush1.msra.mxu0 0.0
        %329 = vmatprep.subr.mxu0 0.0
        %330 = vmatpush1.msra.mxu0 0.0
        %331 = vmatprep.subr.mxu0 0.0
        %332 = vmatpush1.msra.mxu0 0.0
        %333 = vmatprep.subr.mxu0 0.0
        %334 = vmatpush1.msra.mxu0 0.0
        %335 = vmatprep.subr.mxu0 0.0
        %336 = vmatpush1.msra.mxu0 0.0
        %337 = vmatprep.subr.mxu0 0.0
        %338 = vmatpush1.msra.mxu0 0.0
        %339 = vmatprep.subr.mxu0 0.0
        %340 = vmatpush1.msra.mxu0 0.0
        %341 = vmatprep.subr.mxu0 0.0
        %342 = vmatpush1.msra.mxu0 0.0
        %343 = vmatprep.subr.mxu0 0.0
        %344 = vmatpush1.msra.mxu0 0.0
        %345 = vmatprep.subr.mxu0 0.0
        %346 = vmatpush1.msra.mxu0 0.0
        %347 = vmatprep.subr.mxu0 0.0
        %348 = vmatpush1.msra.mxu0 0.0
        %349 = vmatprep.subr.mxu0 0.0
        %350 = vmatpush1.msra.mxu0 0.0
        %351 = vmatprep.mubr.f32.mxu0 0.0
        %352 = vmatmul.mubr.f32.gmra.mrb[0].mxu0 %v280
        %v353 = vpop.f32.mrb[0].mxu0
        %v354 = vadd.f32 %v274, %v353
        %v355 = vpop.f32.mrb[0].mxu0
        %v356 = vadd.f32 %v274, %v355
        %357 = vdwg.mxu0
        %v358 = vxor.u32 %v354, 2147483648
        %v359 = vxor.u32 %v356, 2147483648
        %v360 = vmul.f32 %v358, 1.442695
        %v361 = vpow.pop %v360
        %v362 = vmul.f32 %v359, 1.442695
        %v363 = vpow.pop %v362
        %v364 = vadd.f32 %v361, 1.0
        %v365 = vadd.f32 %v363, 1.0
        %v366 = vrcp.pop %v364
        %v367 = vmul.f32 1.0, %v366
        %v368 = vrcp.pop %v365
        %v369 = vmul.f32 1.0, %v368
        %v370 = vmul.f32 %v354, %v367
        %v371 = vmul.f32 %v356, %v369
        %372 = vst [vmem:[%s260] sm:$0xf] %v370
        %373 = vst [vmem:[%s260 + $0x8] sm:$0xf] %v371
        %374 = vst [vmem:[#allocation2] sm:$0xf] 0.0
        %375 = vst [vmem:[#allocation2 + $0xc] sm:$0xf] 0.0
        %v378 = vcombine.low %v370, %v371
        %380 = vst [vmem:[#allocation2 + $0x4] sm:$0xff] %v378
        %v381 = vld [vmem:[#allocation2] sm:$0xff]
        %v382 = vld [vmem:[#allocation2 + $0x8] sm:$0xf]
        %v383 = vld [vmem:[%s2] sm:$0xf]
        %v384 = vld [vmem:[#allocation3] ss:$8 sm:$0x3]
        %v386 = vlaneseq
        %v387 = vshrl.u32 %v386, 7
        %v388 = vsub.s32 0, %v387
        %v389 = vrot.slane %v384, %v388
        %v390 = vlaneseq
        %v391 = vshrl.u32 %v390, 7
        %v392 = vsub.s32 1, %v391
        %v393 = vrot.slane %v384, %v392
        %v398 = vcombine.high %v381, %v381
        %399 = vrot.lane.b32.xlu0 %v381, 34
        %v400 = vpop.permute.xlu0 %399
        %401 = vrot.lane.b32.xlu0 %v398, 34
        %v402 = vpop.permute.xlu0 %401
        %403 = vrot.lane.b32.xlu0 %v382, 34
        %v404 = vpop.permute.xlu0 %403
        %vm405 = vcmask 277504
        %v406 = vsel %vm405, %v400, %v402
        %v407 = vsel %vm405, %v402, %v404
        %v410 = vmul.f32 %v389, %v406
        %v411 = vmul.f32 %v393, %v407
        %413 = vset.pattern.permute.xlu0 0
        %414 = vperm.xlu0 %413, %v383
        %v415 = vpop.permute.xlu0 %414
        %v417 = vmul.f32 %v415, %v410
        %v418 = vmul.f32 %v415, %v411
        %v419 = vadd.f32 %v417, 0.0
        %v420 = vadd.f32 %v418, 0.0
        %v421 = vld [vmem:[#allocation2] sm:$0xff]
        %v422 = vld [vmem:[#allocation2 + $0x8] sm:$0xf]
        %v423 = vld [vmem:[%s2] sm:$0xf]
        %s424 = scalar_lea.vmem [#allocation3], 1
        %v425 = vld [vmem:[%s424] ss:$8 sm:$0x3]
        %v427 = vlaneseq
        %v428 = vshrl.u32 %v427, 7
        %v429 = vsub.s32 0, %v428
        %v430 = vrot.slane %v425, %v429
        %v431 = vlaneseq
        %v432 = vshrl.u32 %v431, 7
        %v433 = vsub.s32 1, %v432
        %v434 = vrot.slane %v425, %v433
        %v439 = vcombine.high %v421, %v421
        %440 = vrot.lane.b32.xlu0 %v421, 33
        %v441 = vpop.permute.xlu0 %440
        %442 = vrot.lane.b32.xlu0 %v439, 33
        %v443 = vpop.permute.xlu0 %442
        %444 = vrot.lane.b32.xlu0 %v422, 33
        %v445 = vpop.permute.xlu0 %444
        %vm446 = vcmask 269312
        %v447 = vsel %vm446, %v441, %v443
        %v448 = vsel %vm446, %v443, %v445
        %v451 = vmul.f32 %v430, %v447
        %v452 = vmul.f32 %v434, %v448
        %454 = vset.pattern.permute.xlu0 1
        %455 = vperm.xlu0 %454, %v423
        %v456 = vpop.permute.xlu0 %455
        %v458 = vmul.f32 %v456, %v451
        %v459 = vmul.f32 %v456, %v452
        %v460 = vadd.f32 %v458, 0.0
        %v461 = vadd.f32 %v459, 0.0
        %v462 = vld [vmem:[#allocation2] sm:$0xff]
        %v463 = vld [vmem:[#allocation2 + $0x8] sm:$0xf]
        %v464 = vld [vmem:[%s2] sm:$0xf]
        %s465 = scalar_lea.vmem [#allocation3], 2
        %v466 = vld [vmem:[%s465] ss:$8 sm:$0x3]
        %v468 = vlaneseq
        %v469 = vshrl.u32 %v468, 7
        %v470 = vsub.s32 0, %v469
        %v471 = vrot.slane %v466, %v470
        %v472 = vlaneseq
        %v473 = vshrl.u32 %v472, 7
        %v474 = vsub.s32 1, %v473
        %v475 = vrot.slane %v466, %v474
        %v480 = vcombine.high %v462, %v462
        %481 = vrot.lane.b32.xlu0 %v462, 32
        %v482 = vpop.permute.xlu0 %481
        %483 = vrot.lane.b32.xlu0 %v480, 32
        %v484 = vpop.permute.xlu0 %483
        %485 = vrot.lane.b32.xlu0 %v463, 32
        %v486 = vpop.permute.xlu0 %485
        %vm487 = vcmask 261120
        %v488 = vsel %vm487, %v482, %v484
        %v489 = vsel %vm487, %v484, %v486
        %v492 = vmul.f32 %v471, %v488
        %v493 = vmul.f32 %v475, %v489
        %495 = vset.pattern.permute.xlu0 2
        %496 = vperm.xlu0 %495, %v464
        %v497 = vpop.permute.xlu0 %496
        %v499 = vmul.f32 %v497, %v492
        %v500 = vmul.f32 %v497, %v493
        %v501 = vadd.f32 %v419, %v499
        %v502 = vadd.f32 %v420, %v500
        %v503 = vld [vmem:[#allocation2] sm:$0xff]
        %v504 = vld [vmem:[#allocation2 + $0x8] sm:$0xf]
        %v505 = vld [vmem:[%s2] sm:$0xf]
        %s506 = scalar_lea.vmem [#allocation3], 3
        %v507 = vld [vmem:[%s506] ss:$8 sm:$0x3]
        %v509 = vlaneseq
        %v510 = vshrl.u32 %v509, 7
        %v511 = vsub.s32 0, %v510
        %v512 = vrot.slane %v507, %v511
        %v513 = vlaneseq
        %v514 = vshrl.u32 %v513, 7
        %v515 = vsub.s32 1, %v514
        %v516 = vrot.slane %v507, %v515
        %v521 = vcombine.high %v503, %v503
        %522 = vrot.lane.b32.xlu0 %v503, 31
        %v523 = vpop.permute.xlu0 %522
        %524 = vrot.lane.b32.xlu0 %v521, 31
        %v525 = vpop.permute.xlu0 %524
        %526 = vrot.lane.b32.xlu0 %v504, 31
        %v527 = vpop.permute.xlu0 %526
        %vm528 = vcmask 252928
        %v529 = vsel %vm528, %v523, %v525
        %v530 = vsel %vm528, %v525, %v527
        %v533 = vmul.f32 %v512, %v529
        %v534 = vmul.f32 %v516, %v530
        %536 = vset.pattern.permute.xlu0 3
        %537 = vperm.xlu0 %536, %v505
        %v538 = vpop.permute.xlu0 %537
        %v540 = vmul.f32 %v538, %v533
        %v541 = vmul.f32 %v538, %v534
        %v542 = vadd.f32 %v460, %v540
        %v543 = vadd.f32 %v461, %v541
        %v544 = vld [vmem:[#allocation2] sm:$0xff]
        %v545 = vld [vmem:[#allocation2 + $0x8] sm:$0xf]
        %v546 = vld [vmem:[%s2] sm:$0xf]
        %s547 = scalar_lea.vmem [#allocation3], 4
        %v548 = vld [vmem:[%s547] ss:$8 sm:$0x3]
        %v550 = vlaneseq
        %v551 = vshrl.u32 %v550, 7
        %v552 = vsub.s32 0, %v551
        %v553 = vrot.slane %v548, %v552
        %v554 = vlaneseq
        %v555 = vshrl.u32 %v554, 7
        %v556 = vsub.s32 1, %v555
        %v557 = vrot.slane %v548, %v556
        %v562 = vcombine.high %v544, %v544
        %563 = vrot.lane.b32.xlu0 %v544, 30
        %v564 = vpop.permute.xlu0 %563
        %565 = vrot.lane.b32.xlu0 %v562, 30
        %v566 = vpop.permute.xlu0 %565
        %567 = vrot.lane.b32.xlu0 %v545, 30
        %v568 = vpop.permute.xlu0 %567
        %vm569 = vcmask 244736
        %v570 = vsel %vm569, %v564, %v566
        %v571 = vsel %vm569, %v566, %v568
        %v574 = vmul.f32 %v553, %v570
        %v575 = vmul.f32 %v557, %v571
        %577 = vset.pattern.permute.xlu0 4
        %578 = vperm.xlu0 %577, %v546
        %v579 = vpop.permute.xlu0 %578
        %v581 = vmul.f32 %v579, %v574
        %v582 = vmul.f32 %v579, %v575
        %v583 = vadd.f32 %v501, %v581
        %v584 = vadd.f32 %v502, %v582
        %v585 = vld [vmem:[#allocation2] sm:$0xff]
        %v586 = vld [vmem:[#allocation2 + $0x8] sm:$0xf]
        %v587 = vld [vmem:[%s2] sm:$0xf]
        %s588 = scalar_lea.vmem [#allocation3], 5
        %v589 = vld [vmem:[%s588] ss:$8 sm:$0x3]
        %v591 = vlaneseq
        %v592 = vshrl.u32 %v591, 7
        %v593 = vsub.s32 0, %v592
        %v594 = vrot.slane %v589, %v593
        %v595 = vlaneseq
        %v596 = vshrl.u32 %v595, 7
        %v597 = vsub.s32 1, %v596
        %v598 = vrot.slane %v589, %v597
        %v603 = vcombine.high %v585, %v585
        %604 = vrot.lane.b32.xlu0 %v585, 18
        %v605 = vpop.permute.xlu0 %604
        %606 = vrot.lane.b32.xlu0 %v603, 18
        %v607 = vpop.permute.xlu0 %606
        %608 = vrot.lane.b32.xlu0 %v586, 18
        %v609 = vpop.permute.xlu0 %608
        %vm610 = vcmask 146432
        %v611 = vsel %vm610, %v605, %v607
        %v612 = vsel %vm610, %v607, %v609
        %v615 = vmul.f32 %v594, %v611
        %v616 = vmul.f32 %v598, %v612
        %618 = vset.pattern.permute.xlu0 5
        %619 = vperm.xlu0 %618, %v587
        %v620 = vpop.permute.xlu0 %619
        %v622 = vmul.f32 %v620, %v615
        %v623 = vmul.f32 %v620, %v616
        %v624 = vadd.f32 %v542, %v622
        %v625 = vadd.f32 %v543, %v623
        %v626 = vld [vmem:[#allocation2] sm:$0xff]
        %v627 = vld [vmem:[#allocation2 + $0x8] sm:$0xf]
        %v628 = vld [vmem:[%s2] sm:$0xf]
        %s629 = scalar_lea.vmem [#allocation3], 6
        %v630 = vld [vmem:[%s629] ss:$8 sm:$0x3]
        %v632 = vlaneseq
        %v633 = vshrl.u32 %v632, 7
        %v634 = vsub.s32 0, %v633
        %v635 = vrot.slane %v630, %v634
        %v636 = vlaneseq
        %v637 = vshrl.u32 %v636, 7
        %v638 = vsub.s32 1, %v637
        %v639 = vrot.slane %v630, %v638
        %v644 = vcombine.high %v626, %v626
        %645 = vrot.lane.b32.xlu0 %v626, 17
        %v646 = vpop.permute.xlu0 %645
        %647 = vrot.lane.b32.xlu0 %v644, 17
        %v648 = vpop.permute.xlu0 %647
        %649 = vrot.lane.b32.xlu0 %v627, 17
        %v650 = vpop.permute.xlu0 %649
        %vm651 = vcmask 138240
        %v652 = vsel %vm651, %v646, %v648
        %v653 = vsel %vm651, %v648, %v650
        %v656 = vmul.f32 %v635, %v652
        %v657 = vmul.f32 %v639, %v653
        %659 = vset.pattern.permute.xlu0 6
        %660 = vperm.xlu0 %659, %v628
        %v661 = vpop.permute.xlu0 %660
        %v663 = vmul.f32 %v661, %v656
        %v664 = vmul.f32 %v661, %v657
        %v665 = vadd.f32 %v583, %v663
        %v666 = vadd.f32 %v584, %v664
        %v667 = vld [vmem:[#allocation2] sm:$0xff]
        %v668 = vld [vmem:[#allocation2 + $0x8] sm:$0xf]
        %v669 = vld [vmem:[%s2] sm:$0xf]
        %s670 = scalar_lea.vmem [#allocation3], 7
        %v671 = vld [vmem:[%s670] ss:$8 sm:$0x3]
        %v673 = vlaneseq
        %v674 = vshrl.u32 %v673, 7
        %v675 = vsub.s32 0, %v674
        %v676 = vrot.slane %v671, %v675
        %v677 = vlaneseq
        %v678 = vshrl.u32 %v677, 7
        %v679 = vsub.s32 1, %v678
        %v680 = vrot.slane %v671, %v679
        %v685 = vcombine.high %v667, %v667
        %686 = vrot.lane.b32.xlu0 %v667, 16
        %v687 = vpop.permute.xlu0 %686
        %688 = vrot.lane.b32.xlu0 %v685, 16
        %v689 = vpop.permute.xlu0 %688
        %690 = vrot.lane.b32.xlu0 %v668, 16
        %v691 = vpop.permute.xlu0 %690
        %vm692 = vcmask 130048
        %v693 = vsel %vm692, %v687, %v689
        %v694 = vsel %vm692, %v689, %v691
        %v697 = vmul.f32 %v676, %v693
        %v698 = vmul.f32 %v680, %v694
        %700 = vset.pattern.permute.xlu0 7
        %701 = vperm.xlu0 %700, %v669
        %v702 = vpop.permute.xlu0 %701
        %v704 = vmul.f32 %v702, %v697
        %v705 = vmul.f32 %v702, %v698
        %v706 = vadd.f32 %v624, %v704
        %v707 = vadd.f32 %v625, %v705
        %v708 = vld [vmem:[#allocation2] sm:$0xff]
        %v709 = vld [vmem:[#allocation2 + $0x8] sm:$0xf]
        %v710 = vld [vmem:[%s2] sm:$0xf]
        %s711 = scalar_lea.vmem [#allocation3], 16
        %v712 = vld [vmem:[%s711] ss:$8 sm:$0x3]
        %v714 = vlaneseq
        %v715 = vshrl.u32 %v714, 7
        %v716 = vsub.s32 0, %v715
        %v717 = vrot.slane %v712, %v716
        %v718 = vlaneseq
        %v719 = vshrl.u32 %v718, 7
        %v720 = vsub.s32 1, %v719
        %v721 = vrot.slane %v712, %v720
        %v726 = vcombine.high %v708, %v708
        %727 = vrot.lane.b32.xlu0 %v708, 15
        %v728 = vpop.permute.xlu0 %727
        %729 = vrot.lane.b32.xlu0 %v726, 15
        %v730 = vpop.permute.xlu0 %729
        %731 = vrot.lane.b32.xlu0 %v709, 15
        %v732 = vpop.permute.xlu0 %731
        %vm733 = vcmask 121856
        %v734 = vsel %vm733, %v728, %v730
        %v735 = vsel %vm733, %v730, %v732
        %v738 = vmul.f32 %v717, %v734
        %v739 = vmul.f32 %v721, %v735
        %741 = vset.pattern.permute.xlu0 8
        %742 = vperm.xlu0 %741, %v710
        %v743 = vpop.permute.xlu0 %742
        %v745 = vmul.f32 %v743, %v738
        %v746 = vmul.f32 %v743, %v739
        %v747 = vadd.f32 %v665, %v745
        %v748 = vadd.f32 %v666, %v746
        %v749 = vld [vmem:[#allocation2] sm:$0xff]
        %v750 = vld [vmem:[#allocation2 + $0x8] sm:$0xf]
        %v751 = vld [vmem:[%s2] sm:$0xf]
        %s752 = scalar_lea.vmem [#allocation3], 17
        %v753 = vld [vmem:[%s752] ss:$8 sm:$0x3]
        %v755 = vlaneseq
        %v756 = vshrl.u32 %v755, 7
        %v757 = vsub.s32 0, %v756
        %v758 = vrot.slane %v753, %v757
        %v759 = vlaneseq
        %v760 = vshrl.u32 %v759, 7
        %v761 = vsub.s32 1, %v760
        %v762 = vrot.slane %v753, %v761
        %v767 = vcombine.high %v749, %v749
        %768 = vrot.lane.b32.xlu0 %v749, 14
        %v769 = vpop.permute.xlu0 %768
        %770 = vrot.lane.b32.xlu0 %v767, 14
        %v771 = vpop.permute.xlu0 %770
        %772 = vrot.lane.b32.xlu0 %v750, 14
        %v773 = vpop.permute.xlu0 %772
        %vm774 = vcmask 113664
        %v775 = vsel %vm774, %v769, %v771
        %v776 = vsel %vm774, %v771, %v773
        %v779 = vmul.f32 %v758, %v775
        %v780 = vmul.f32 %v762, %v776
        %782 = vset.pattern.permute.xlu0 9
        %783 = vperm.xlu0 %782, %v751
        %v784 = vpop.permute.xlu0 %783
        %v786 = vmul.f32 %v784, %v779
        %v787 = vmul.f32 %v784, %v780
        %v788 = vadd.f32 %v706, %v786
        %v789 = vadd.f32 %v707, %v787
        %v790 = vld [vmem:[#allocation2] sm:$0xff]
        %v791 = vld [vmem:[#allocation2 + $0x8] sm:$0xf]
        %v792 = vld [vmem:[%s2] sm:$0xf]
        %s793 = scalar_lea.vmem [#allocation3], 18
        %v794 = vld [vmem:[%s793] ss:$8 sm:$0x3]
        %v796 = vlaneseq
        %v797 = vshrl.u32 %v796, 7
        %v798 = vsub.s32 0, %v797
        %v799 = vrot.slane %v794, %v798
        %v800 = vlaneseq
        %v801 = vshrl.u32 %v800, 7
        %v802 = vsub.s32 1, %v801
        %v803 = vrot.slane %v794, %v802
        %v808 = vcombine.high %v790, %v790
        %809 = vrot.lane.b32.xlu0 %v790, 2
        %v810 = vpop.permute.xlu0 %809
        %811 = vrot.lane.b32.xlu0 %v808, 2
        %v812 = vpop.permute.xlu0 %811
        %813 = vrot.lane.b32.xlu0 %v791, 2
        %v814 = vpop.permute.xlu0 %813
        %vm815 = vcmask 15360
        %v816 = vsel %vm815, %v810, %v812
        %v817 = vsel %vm815, %v812, %v814
        %v820 = vmul.f32 %v799, %v816
        %v821 = vmul.f32 %v803, %v817
        %823 = vset.pattern.permute.xlu0 10
        %824 = vperm.xlu0 %823, %v792
        %v825 = vpop.permute.xlu0 %824
        %v827 = vmul.f32 %v825, %v820
        %v828 = vmul.f32 %v825, %v821
        %v829 = vadd.f32 %v747, %v827
        %v830 = vadd.f32 %v748, %v828
        %v831 = vld [vmem:[#allocation2] sm:$0xff]
        %v832 = vld [vmem:[#allocation2 + $0x8] sm:$0xf]
        %v833 = vld [vmem:[%s2] sm:$0xf]
        %s834 = scalar_lea.vmem [#allocation3], 19
        %v835 = vld [vmem:[%s834] ss:$8 sm:$0x3]
        %v837 = vlaneseq
        %v838 = vshrl.u32 %v837, 7
        %v839 = vsub.s32 0, %v838
        %v840 = vrot.slane %v835, %v839
        %v841 = vlaneseq
        %v842 = vshrl.u32 %v841, 7
        %v843 = vsub.s32 1, %v842
        %v844 = vrot.slane %v835, %v843
        %v849 = vcombine.high %v831, %v831
        %850 = vrot.lane.b32.xlu0 %v831, 1
        %v851 = vpop.permute.xlu0 %850
        %852 = vrot.lane.b32.xlu0 %v849, 1
        %v853 = vpop.permute.xlu0 %852
        %854 = vrot.lane.b32.xlu0 %v832, 1
        %v855 = vpop.permute.xlu0 %854
        %vm856 = vcmask 7168
        %v857 = vsel %vm856, %v851, %v853
        %v858 = vsel %vm856, %v853, %v855
        %v861 = vmul.f32 %v840, %v857
        %v862 = vmul.f32 %v844, %v858
        %864 = vset.pattern.permute.xlu0 11
        %865 = vperm.xlu0 %864, %v833
        %v866 = vpop.permute.xlu0 %865
        %v868 = vmul.f32 %v866, %v861
        %v869 = vmul.f32 %v866, %v862
        %v870 = vadd.f32 %v788, %v868
        %v871 = vadd.f32 %v789, %v869
        %v872 = vld [vmem:[#allocation2 + $0x4] sm:$0xff]
        %v873 = vld [vmem:[%s2] sm:$0xf]
        %s874 = scalar_lea.vmem [#allocation3], 20
        %v875 = vld [vmem:[%s874] ss:$8 sm:$0x3]
        %v877 = vlaneseq
        %v878 = vshrl.u32 %v877, 7
        %v879 = vsub.s32 0, %v878
        %v880 = vrot.slane %v875, %v879
        %v881 = vlaneseq
        %v882 = vshrl.u32 %v881, 7
        %v883 = vsub.s32 1, %v882
        %v884 = vrot.slane %v875, %v883
        %v888 = vcombine.high %v872, %v872
        %v890 = vmul.f32 %v880, %v872
        %v891 = vmul.f32 %v884, %v888
        %893 = vset.pattern.permute.xlu0 12
        %894 = vperm.xlu0 %893, %v873
        %v895 = vpop.permute.xlu0 %894
        %v897 = vmul.f32 %v895, %v890
        %v898 = vmul.f32 %v895, %v891
        %v899 = vadd.f32 %v829, %v897
        %v900 = vadd.f32 %v830, %v898
        %v901 = vld [vmem:[#allocation2 + $0x4] sm:$0xff]
        %v902 = vld [vmem:[#allocation2 + $0xc] sm:$0xf]
        %v903 = vld [vmem:[%s2] sm:$0xf]
        %s904 = scalar_lea.vmem [#allocation3], 21
        %v905 = vld [vmem:[%s904] ss:$8 sm:$0x3]
        %v907 = vlaneseq
        %v908 = vshrl.u32 %v907, 7
        %v909 = vsub.s32 0, %v908
        %v910 = vrot.slane %v905, %v909
        %v911 = vlaneseq
        %v912 = vshrl.u32 %v911, 7
        %v913 = vsub.s32 1, %v912
        %v914 = vrot.slane %v905, %v913
        %v919 = vcombine.high %v901, %v901
        %920 = vrot.lane.b32.xlu0 %v901, 127
        %v921 = vpop.permute.xlu0 %920
        %922 = vrot.lane.b32.xlu0 %v919, 127
        %v923 = vpop.permute.xlu0 %922
        %924 = vrot.lane.b32.xlu0 %v902, 127
        %v925 = vpop.permute.xlu0 %924
        %vm926 = vcmask 1039360
        %v927 = vsel %vm926, %v921, %v923
        %v928 = vsel %vm926, %v923, %v925
        %v931 = vmul.f32 %v910, %v927
        %v932 = vmul.f32 %v914, %v928
        %934 = vset.pattern.permute.xlu0 13
        %935 = vperm.xlu0 %934, %v903
        %v936 = vpop.permute.xlu0 %935
        %v938 = vmul.f32 %v936, %v931
        %v939 = vmul.f32 %v936, %v932
        %v940 = vadd.f32 %v870, %v938
        %v941 = vadd.f32 %v871, %v939
        %v942 = vld [vmem:[#allocation2 + $0x4] sm:$0xff]
        %v943 = vld [vmem:[#allocation2 + $0xc] sm:$0xf]
        %v944 = vld [vmem:[%s2] sm:$0xf]
        %s945 = scalar_lea.vmem [#allocation3], 22
        %v946 = vld [vmem:[%s945] ss:$8 sm:$0x3]
        %v948 = vlaneseq
        %v949 = vshrl.u32 %v948, 7
        %v950 = vsub.s32 0, %v949
        %v951 = vrot.slane %v946, %v950
        %v952 = vlaneseq
        %v953 = vshrl.u32 %v952, 7
        %v954 = vsub.s32 1, %v953
        %v955 = vrot.slane %v946, %v954
        %v960 = vcombine.high %v942, %v942
        %961 = vrot.lane.b32.xlu0 %v942, 126
        %v962 = vpop.permute.xlu0 %961
        %963 = vrot.lane.b32.xlu0 %v960, 126
        %v964 = vpop.permute.xlu0 %963
        %965 = vrot.lane.b32.xlu0 %v943, 126
        %v966 = vpop.permute.xlu0 %965
        %vm967 = vcmask 1031168
        %v968 = vsel %vm967, %v962, %v964
        %v969 = vsel %vm967, %v964, %v966
        %v972 = vmul.f32 %v951, %v968
        %v973 = vmul.f32 %v955, %v969
        %975 = vset.pattern.permute.xlu0 14
        %976 = vperm.xlu0 %975, %v944
        %v977 = vpop.permute.xlu0 %976
        %v979 = vmul.f32 %v977, %v972
        %v980 = vmul.f32 %v977, %v973
        %v981 = vadd.f32 %v899, %v979
        %v982 = vadd.f32 %v900, %v980
        %v983 = vld [vmem:[#allocation2 + $0x4] sm:$0xff]
        %v984 = vld [vmem:[#allocation2 + $0xc] sm:$0xf]
        %v985 = vld [vmem:[%s2] sm:$0xf]
        %s986 = scalar_lea.vmem [#allocation3], 23
        %v987 = vld [vmem:[%s986] ss:$8 sm:$0x3]
        %v989 = vlaneseq
        %v990 = vshrl.u32 %v989, 7
        %v991 = vsub.s32 0, %v990
        %v992 = vrot.slane %v987, %v991
        %v993 = vlaneseq
        %v994 = vshrl.u32 %v993, 7
        %v995 = vsub.s32 1, %v994
        %v996 = vrot.slane %v987, %v995
        %v1001 = vcombine.high %v983, %v983
        %1002 = vrot.lane.b32.xlu0 %v983, 114
        %v1003 = vpop.permute.xlu0 %1002
        %1004 = vrot.lane.b32.xlu0 %v1001, 114
        %v1005 = vpop.permute.xlu0 %1004
        %1006 = vrot.lane.b32.xlu0 %v984, 114
        %v1007 = vpop.permute.xlu0 %1006
        %vm1008 = vcmask 932864
        %v1009 = vsel %vm1008, %v1003, %v1005
        %v1010 = vsel %vm1008, %v1005, %v1007
        %v1013 = vmul.f32 %v992, %v1009
        %v1014 = vmul.f32 %v996, %v1010
        %1016 = vset.pattern.permute.xlu0 15
        %1017 = vperm.xlu0 %1016, %v985
        %v1018 = vpop.permute.xlu0 %1017
        %v1020 = vmul.f32 %v1018, %v1013
        %v1021 = vmul.f32 %v1018, %v1014
        %v1022 = vadd.f32 %v940, %v1020
        %v1023 = vadd.f32 %v941, %v1021
        %v1024 = vld [vmem:[#allocation2 + $0x4] sm:$0xff]
        %v1025 = vld [vmem:[#allocation2 + $0xc] sm:$0xf]
        %v1026 = vld [vmem:[%s2] sm:$0xf]
        %s1027 = scalar_lea.vmem [#allocation3], 32
        %v1028 = vld [vmem:[%s1027] ss:$8 sm:$0x3]
        %v1030 = vlaneseq
        %v1031 = vshrl.u32 %v1030, 7
        %v1032 = vsub.s32 0, %v1031
        %v1033 = vrot.slane %v1028, %v1032
        %v1034 = vlaneseq
        %v1035 = vshrl.u32 %v1034, 7
        %v1036 = vsub.s32 1, %v1035
        %v1037 = vrot.slane %v1028, %v1036
        %v1042 = vcombine.high %v1024, %v1024
        %1043 = vrot.lane.b32.xlu0 %v1024, 113
        %v1044 = vpop.permute.xlu0 %1043
        %1045 = vrot.lane.b32.xlu0 %v1042, 113
        %v1046 = vpop.permute.xlu0 %1045
        %1047 = vrot.lane.b32.xlu0 %v1025, 113
        %v1048 = vpop.permute.xlu0 %1047
        %vm1049 = vcmask 924672
        %v1050 = vsel %vm1049, %v1044, %v1046
        %v1051 = vsel %vm1049, %v1046, %v1048
        %v1054 = vmul.f32 %v1033, %v1050
        %v1055 = vmul.f32 %v1037, %v1051
        %1057 = vset.pattern.permute.xlu0 16
        %1058 = vperm.xlu0 %1057, %v1026
        %v1059 = vpop.permute.xlu0 %1058
        %v1061 = vmul.f32 %v1059, %v1054
        %v1062 = vmul.f32 %v1059, %v1055
        %v1063 = vadd.f32 %v981, %v1061
        %v1064 = vadd.f32 %v982, %v1062
        %v1065 = vld [vmem:[#allocation2 + $0x4] sm:$0xff]
        %v1066 = vld [vmem:[#allocation2 + $0xc] sm:$0xf]
        %v1067 = vld [vmem:[%s2] sm:$0xf]
        %s1068 = scalar_lea.vmem [#allocation3], 33
        %v1069 = vld [vmem:[%s1068] ss:$8 sm:$0x3]
        %v1071 = vlaneseq
        %v1072 = vshrl.u32 %v1071, 7
        %v1073 = vsub.s32 0, %v1072
        %v1074 = vrot.slane %v1069, %v1073
        %v1075 = vlaneseq
        %v1076 = vshrl.u32 %v1075, 7
        %v1077 = vsub.s32 1, %v1076
        %v1078 = vrot.slane %v1069, %v1077
        %v1083 = vcombine.high %v1065, %v1065
        %1084 = vrot.lane.b32.xlu0 %v1065, 112
        %v1085 = vpop.permute.xlu0 %1084
        %1086 = vrot.lane.b32.xlu0 %v1083, 112
        %v1087 = vpop.permute.xlu0 %1086
        %1088 = vrot.lane.b32.xlu0 %v1066, 112
        %v1089 = vpop.permute.xlu0 %1088
        %vm1090 = vcmask 916480
        %v1091 = vsel %vm1090, %v1085, %v1087
        %v1092 = vsel %vm1090, %v1087, %v1089
        %v1095 = vmul.f32 %v1074, %v1091
        %v1096 = vmul.f32 %v1078, %v1092
        %1098 = vset.pattern.permute.xlu0 17
        %1099 = vperm.xlu0 %1098, %v1067
        %v1100 = vpop.permute.xlu0 %1099
        %v1102 = vmul.f32 %v1100, %v1095
        %v1103 = vmul.f32 %v1100, %v1096
        %v1104 = vadd.f32 %v1022, %v1102
        %v1105 = vadd.f32 %v1023, %v1103
        %v1106 = vld [vmem:[#allocation2 + $0x4] sm:$0xff]
        %v1107 = vld [vmem:[#allocation2 + $0xc] sm:$0xf]
        %v1108 = vld [vmem:[%s2] sm:$0xf]
        %s1109 = scalar_lea.vmem [#allocation3], 34
        %v1110 = vld [vmem:[%s1109] ss:$8 sm:$0x3]
        %v1112 = vlaneseq
        %v1113 = vshrl.u32 %v1112, 7
        %v1114 = vsub.s32 0, %v1113
        %v1115 = vrot.slane %v1110, %v1114
        %v1116 = vlaneseq
        %v1117 = vshrl.u32 %v1116, 7
        %v1118 = vsub.s32 1, %v1117
        %v1119 = vrot.slane %v1110, %v1118
        %v1124 = vcombine.high %v1106, %v1106
        %1125 = vrot.lane.b32.xlu0 %v1106, 111
        %v1126 = vpop.permute.xlu0 %1125
        %1127 = vrot.lane.b32.xlu0 %v1124, 111
        %v1128 = vpop.permute.xlu0 %1127
        %1129 = vrot.lane.b32.xlu0 %v1107, 111
        %v1130 = vpop.permute.xlu0 %1129
        %vm1131 = vcmask 908288
        %v1132 = vsel %vm1131, %v1126, %v1128
        %v1133 = vsel %vm1131, %v1128, %v1130
        %v1136 = vmul.f32 %v1115, %v1132
        %v1137 = vmul.f32 %v1119, %v1133
        %1139 = vset.pattern.permute.xlu0 18
        %1140 = vperm.xlu0 %1139, %v1108
        %v1141 = vpop.permute.xlu0 %1140
        %v1143 = vmul.f32 %v1141, %v1136
        %v1144 = vmul.f32 %v1141, %v1137
        %v1145 = vadd.f32 %v1063, %v1143
        %v1146 = vadd.f32 %v1064, %v1144
        %v1147 = vld [vmem:[#allocation2 + $0x4] sm:$0xff]
        %v1148 = vld [vmem:[#allocation2 + $0xc] sm:$0xf]
        %v1149 = vld [vmem:[%s2] sm:$0xf]
        %s1150 = scalar_lea.vmem [#allocation3], 35
        %v1151 = vld [vmem:[%s1150] ss:$8 sm:$0x3]
        %v1153 = vlaneseq
        %v1154 = vshrl.u32 %v1153, 7
        %v1155 = vsub.s32 0, %v1154
        %v1156 = vrot.slane %v1151, %v1155
        %v1157 = vlaneseq
        %v1158 = vshrl.u32 %v1157, 7
        %v1159 = vsub.s32 1, %v1158
        %v1160 = vrot.slane %v1151, %v1159
        %v1165 = vcombine.high %v1147, %v1147
        %1166 = vrot.lane.b32.xlu0 %v1147, 110
        %v1167 = vpop.permute.xlu0 %1166
        %1168 = vrot.lane.b32.xlu0 %v1165, 110
        %v1169 = vpop.permute.xlu0 %1168
        %1170 = vrot.lane.b32.xlu0 %v1148, 110
        %v1171 = vpop.permute.xlu0 %1170
        %vm1172 = vcmask 900096
        %v1173 = vsel %vm1172, %v1167, %v1169
        %v1174 = vsel %vm1172, %v1169, %v1171
        %v1177 = vmul.f32 %v1156, %v1173
        %v1178 = vmul.f32 %v1160, %v1174
        %1180 = vset.pattern.permute.xlu0 19
        %1181 = vperm.xlu0 %1180, %v1149
        %v1182 = vpop.permute.xlu0 %1181
        %v1184 = vmul.f32 %v1182, %v1177
        %v1185 = vmul.f32 %v1182, %v1178
        %v1186 = vadd.f32 %v1104, %v1184
        %v1187 = vadd.f32 %v1105, %v1185
        %v1188 = vld [vmem:[#allocation2 + $0x4] sm:$0xff]
        %v1189 = vld [vmem:[#allocation2 + $0xc] sm:$0xf]
        %v1190 = vld [vmem:[%s2] sm:$0xf]
        %s1191 = scalar_lea.vmem [#allocation3], 36
        %v1192 = vld [vmem:[%s1191] ss:$8 sm:$0x3]
        %v1194 = vlaneseq
        %v1195 = vshrl.u32 %v1194, 7
        %v1196 = vsub.s32 0, %v1195
        %v1197 = vrot.slane %v1192, %v1196
        %v1198 = vlaneseq
        %v1199 = vshrl.u32 %v1198, 7
        %v1200 = vsub.s32 1, %v1199
        %v1201 = vrot.slane %v1192, %v1200
        %v1206 = vcombine.high %v1188, %v1188
        %1207 = vrot.lane.b32.xlu0 %v1188, 98
        %v1208 = vpop.permute.xlu0 %1207
        %1209 = vrot.lane.b32.xlu0 %v1206, 98
        %v1210 = vpop.permute.xlu0 %1209
        %1211 = vrot.lane.b32.xlu0 %v1189, 98
        %v1212 = vpop.permute.xlu0 %1211
        %vm1213 = vcmask 801792
        %v1214 = vsel %vm1213, %v1208, %v1210
        %v1215 = vsel %vm1213, %v1210, %v1212
        %v1218 = vmul.f32 %v1197, %v1214
        %v1219 = vmul.f32 %v1201, %v1215
        %1221 = vset.pattern.permute.xlu0 20
        %1222 = vperm.xlu0 %1221, %v1190
        %v1223 = vpop.permute.xlu0 %1222
        %v1225 = vmul.f32 %v1223, %v1218
        %v1226 = vmul.f32 %v1223, %v1219
        %v1227 = vadd.f32 %v1145, %v1225
        %v1228 = vadd.f32 %v1146, %v1226
        %v1229 = vld [vmem:[#allocation2 + $0x4] sm:$0xff]
        %v1230 = vld [vmem:[#allocation2 + $0xc] sm:$0xf]
        %v1231 = vld [vmem:[%s2] sm:$0xf]
        %s1232 = scalar_lea.vmem [#allocation3], 37
        %v1233 = vld [vmem:[%s1232] ss:$8 sm:$0x3]
        %v1235 = vlaneseq
        %v1236 = vshrl.u32 %v1235, 7
        %v1237 = vsub.s32 0, %v1236
        %v1238 = vrot.slane %v1233, %v1237
        %v1239 = vlaneseq
        %v1240 = vshrl.u32 %v1239, 7
        %v1241 = vsub.s32 1, %v1240
        %v1242 = vrot.slane %v1233, %v1241
        %v1247 = vcombine.high %v1229, %v1229
        %1248 = vrot.lane.b32.xlu0 %v1229, 97
        %v1249 = vpop.permute.xlu0 %1248
        %1250 = vrot.lane.b32.xlu0 %v1247, 97
        %v1251 = vpop.permute.xlu0 %1250
        %1252 = vrot.lane.b32.xlu0 %v1230, 97
        %v1253 = vpop.permute.xlu0 %1252
        %vm1254 = vcmask 793600
        %v1255 = vsel %vm1254, %v1249, %v1251
        %v1256 = vsel %vm1254, %v1251, %v1253
        %v1259 = vmul.f32 %v1238, %v1255
        %v1260 = vmul.f32 %v1242, %v1256
        %1262 = vset.pattern.permute.xlu0 21
        %1263 = vperm.xlu0 %1262, %v1231
        %v1264 = vpop.permute.xlu0 %1263
        %v1266 = vmul.f32 %v1264, %v1259
        %v1267 = vmul.f32 %v1264, %v1260
        %v1268 = vadd.f32 %v1186, %v1266
        %v1269 = vadd.f32 %v1187, %v1267
        %v1270 = vld [vmem:[#allocation2 + $0x4] sm:$0xff]
        %v1271 = vld [vmem:[#allocation2 + $0xc] sm:$0xf]
        %v1272 = vld [vmem:[%s2] sm:$0xf]
        %s1273 = scalar_lea.vmem [#allocation3], 38
        %v1274 = vld [vmem:[%s1273] ss:$8 sm:$0x3]
        %v1276 = vlaneseq
        %v1277 = vshrl.u32 %v1276, 7
        %v1278 = vsub.s32 0, %v1277
        %v1279 = vrot.slane %v1274, %v1278
        %v1280 = vlaneseq
        %v1281 = vshrl.u32 %v1280, 7
        %v1282 = vsub.s32 1, %v1281
        %v1283 = vrot.slane %v1274, %v1282
        %v1288 = vcombine.high %v1270, %v1270
        %1289 = vrot.lane.b32.xlu0 %v1270, 96
        %v1290 = vpop.permute.xlu0 %1289
        %1291 = vrot.lane.b32.xlu0 %v1288, 96
        %v1292 = vpop.permute.xlu0 %1291
        %1293 = vrot.lane.b32.xlu0 %v1271, 96
        %v1294 = vpop.permute.xlu0 %1293
        %vm1295 = vcmask 785408
        %v1296 = vsel %vm1295, %v1290, %v1292
        %v1297 = vsel %vm1295, %v1292, %v1294
        %v1300 = vmul.f32 %v1279, %v1296
        %v1301 = vmul.f32 %v1283, %v1297
        %1303 = vset.pattern.permute.xlu0 22
        %1304 = vperm.xlu0 %1303, %v1272
        %v1305 = vpop.permute.xlu0 %1304
        %v1307 = vmul.f32 %v1305, %v1300
        %v1308 = vmul.f32 %v1305, %v1301
        %v1309 = vadd.f32 %v1227, %v1307
        %v1310 = vadd.f32 %v1228, %v1308
        %v1311 = vld [vmem:[#allocation2 + $0x4] sm:$0xff]
        %v1312 = vld [vmem:[#allocation2 + $0xc] sm:$0xf]
        %v1313 = vld [vmem:[%s2] sm:$0xf]
        %s1314 = scalar_lea.vmem [#allocation3], 39
        %v1315 = vld [vmem:[%s1314] ss:$8 sm:$0x3]
        %v1317 = vlaneseq
        %v1318 = vshrl.u32 %v1317, 7
        %v1319 = vsub.s32 0, %v1318
        %v1320 = vrot.slane %v1315, %v1319
        %v1321 = vlaneseq
        %v1322 = vshrl.u32 %v1321, 7
        %v1323 = vsub.s32 1, %v1322
        %v1324 = vrot.slane %v1315, %v1323
        %v1329 = vcombine.high %v1311, %v1311
        %1330 = vrot.lane.b32.xlu0 %v1311, 95
        %v1331 = vpop.permute.xlu0 %1330
        %1332 = vrot.lane.b32.xlu0 %v1329, 95
        %v1333 = vpop.permute.xlu0 %1332
        %1334 = vrot.lane.b32.xlu0 %v1312, 95
        %v1335 = vpop.permute.xlu0 %1334
        %vm1336 = vcmask 777216
        %v1337 = vsel %vm1336, %v1331, %v1333
        %v1338 = vsel %vm1336, %v1333, %v1335
        %v1341 = vmul.f32 %v1320, %v1337
        %v1342 = vmul.f32 %v1324, %v1338
        %1344 = vset.pattern.permute.xlu0 23
        %1345 = vperm.xlu0 %1344, %v1313
        %v1346 = vpop.permute.xlu0 %1345
        %v1348 = vmul.f32 %v1346, %v1341
        %v1349 = vmul.f32 %v1346, %v1342
        %v1350 = vadd.f32 %v1268, %v1348
        %v1351 = vadd.f32 %v1269, %v1349
        %v1352 = vld [vmem:[#allocation2 + $0x4] sm:$0xff]
        %v1353 = vld [vmem:[#allocation2 + $0xc] sm:$0xf]
        %v1354 = vld [vmem:[%s2] sm:$0xf]
        %s1355 = scalar_lea.vmem [#allocation3], 48
        %v1356 = vld [vmem:[%s1355] ss:$8 sm:$0x3]
        %v1358 = vlaneseq
        %v1359 = vshrl.u32 %v1358, 7
        %v1360 = vsub.s32 0, %v1359
        %v1361 = vrot.slane %v1356, %v1360
        %v1362 = vlaneseq
        %v1363 = vshrl.u32 %v1362, 7
        %v1364 = vsub.s32 1, %v1363
        %v1365 = vrot.slane %v1356, %v1364
        %v1370 = vcombine.high %v1352, %v1352
        %1371 = vrot.lane.b32.xlu0 %v1352, 94
        %v1372 = vpop.permute.xlu0 %1371
        %1373 = vrot.lane.b32.xlu0 %v1370, 94
        %v1374 = vpop.permute.xlu0 %1373
        %1375 = vrot.lane.b32.xlu0 %v1353, 94
        %v1376 = vpop.permute.xlu0 %1375
        %vm1377 = vcmask 769024
        %v1378 = vsel %vm1377, %v1372, %v1374
        %v1379 = vsel %vm1377, %v1374, %v1376
        %v1382 = vmul.f32 %v1361, %v1378
        %v1383 = vmul.f32 %v1365, %v1379
        %1385 = vset.pattern.permute.xlu0 24
        %1386 = vperm.xlu0 %1385, %v1354
        %v1387 = vpop.permute.xlu0 %1386
        %v1389 = vmul.f32 %v1387, %v1382
        %v1390 = vmul.f32 %v1387, %v1383
        %v1391 = vadd.f32 %v1309, %v1389
        %v1392 = vadd.f32 %v1310, %v1390
        %v1393 = vadd.f32 %v1391, %v1350
        %v1394 = vadd.f32 %v1392, %v1351
        %v1395 = vld [vmem:[%s3] sm:$0xf]
        %1397 = vset.pattern.permute.xlu0 0
        %1398 = vperm.xlu0 %1397, %v1395
        %v1399 = vpop.permute.xlu0 %1398
        %v1401 = vadd.f32 %v1393, %v1399
        %v1402 = vadd.f32 %v1394, %v1399
        %v1403 = vxor.u32 %v1401, 2147483648
        %v1404 = vxor.u32 %v1402, 2147483648
        %v1405 = vmul.f32 %v1403, 1.442695
        %v1406 = vpow.pop %v1405
        %v1407 = vmul.f32 %v1404, 1.442695
        %v1408 = vpow.pop %v1407
        %v1409 = vadd.f32 %v1406, 1.0
        %v1410 = vadd.f32 %v1408, 1.0
        %v1411 = vrcp.pop %v1409
        %v1412 = vmul.f32 1.0, %v1411
        %v1413 = vrcp.pop %v1410
        %v1414 = vmul.f32 1.0, %v1413
        %v1415 = vmul.f32 %v1401, %v1412
        %v1416 = vmul.f32 %v1402, %v1414
        %v1419 = vrot.slane %v1415, 4
        %v1420 = vrot.slane %v1416, 4
        %1423 = vst [vmem:[%s260] sm:$0xf0] %v1419
        %1424 = vst [vmem:[%s260 + $0x8] sm:$0xf0] %v1420
        %s1425 = sand.u32 %s160, 1
        %s1426 = scalar_lea.sflag [#allocation5], %s1425
        %s1427 = sand.u32 %s160, 1
        %s1428 = smul.addr %s1427, 16
        %s1429 = scalar_lea.vmem [#allocation6], %s1428
        // Predicated region
        $region49: #{tpu_custom_call.1} parent=43 // pred_check
          %p1430 = pneg %p170
        $region50: #{tpu_custom_call.1} parent=43 // pred_check_branch
          %1432 = sbr.rel (%p1430) target = $region52
        $region51: #{tpu_custom_call.1} parent=43 // pred_region
          %s1433 = smul.u32 2, %s21
          %s1435 = ssub.s32 256, 256
          %1436 = vsyncadd %s1426, %s1435
          %s1437 = smul.addr %s1433, 128
          %s1438 = scalar_lea.hbm %s6, %s1437
          %s1440 = sshll.u32 %s1429, 4
          %s1441 = int_to_ptr.vmem [resolvable:$true] %s1440
          %1443 = dma.vmem_to_hbm [thread:$0]  %s1441, 256, %s1438, %s1426
        $region52: #{tpu_custom_call.1} parent=43 // pred_fallthru
          _
      $region44: #{tpu_custom_call.1} parent=5 // pred_fallthru
        _
      %p1444 = scmp.le.s32.totalorder 2, %s16
      // Predicated region
      $region53: #{tpu_custom_call.1} parent=5 // pred_check
        %p1445 = pneg %p1444
      $region54: #{tpu_custom_call.1} parent=5 // pred_check_branch
        %1447 = sbr.rel (%p1445) target = $region56
      $region55: #{tpu_custom_call.1} parent=5 // pred_region
        %s1448 = ssub.s32 %s16, 2
        // Predicated region
        $region57: #{tpu_custom_call.1} parent=55 // pred_check
          %p1449 = pneg %p176
        $region58: #{tpu_custom_call.1} parent=55 // pred_check_branch
          %1451 = sbr.rel (%p1449) target = $region60
        $region59: #{tpu_custom_call.1} parent=55 // pred_region
          %s1452 = sand.u32 %s161, 1
          %s1453 = scalar_lea.sflag [#allocation5], %s1452
          %s1454 = sand.u32 %s161, 1
          %s1455 = smul.addr %s1454, 16
          %s1456 = scalar_lea.vmem [#allocation6], %s1455
          %1457 = dma.done %s1453, 256
        $region60: #{tpu_custom_call.1} parent=55 // pred_fallthru
          _
      $region56: #{tpu_custom_call.1} parent=5 // pred_fallthru
        _
    $region6: #{tpu_custom_call.1} parent=1 // loop_footer
      %s20 = sadd.s32 1, %s16
    $region7: #{tpu_custom_call.1} parent=1 // loop_footer_branch
      %15 = sbr.rel target = $region3
    $region8: #{tpu_custom_call.1} parent=1 // loop_exit
      _
    %1458 = vsyncpa [#allocation4], 1
    %s1459 = scalar_lea.sflag [#allocation4], 1
    %1460 = vsyncpa %s1459, 1
    %1461 = vsyncpa [#allocation5], 1
    %s1462 = scalar_lea.sflag [#allocation5], 1
    %1463 = vsyncpa %s1462, 1

</llo_original>
